<compile_context>
chip_gen: v7x
topology: tpu7x:2x2x1
jax: 0.10.0
libtpu: 0.0.40
codegen_flags: <defaults>
</compile_context>

<pallas_src>
import functools
import math

import jax
import jax.numpy as jnp
from jax.experimental import pallas as pl
from jax.experimental.pallas import tpu as pltpu

_LANE = 128          # vreg lane width: per-tap patch column blocks are 128-aligned
_MAX_ROWS = 256      # target output rows per chunk (amortize gather + epilogue)
_LN_EPS = 1e-5
_GELU_TANH = True    # tanh-approx GELU runs on the EUP slot; False -> exact erf


def _ceil_to(x, m):
    return -(-x // m) * m


def _pick_h_blk(H, W, max_rows=_MAX_ROWS):
    """Largest divisor of H such that H_BLK * W <= max_rows (>= 1)."""
    if H * W <= max_rows:
        return H
    best = 1
    for d in range(1, H + 1):
        if H % d == 0 and d * W <= max_rows:
            best = d
    return best


# ----------------------------------------------------------------------------
# Fused conv kernel: im2col 3-D conv (+ bias) [+ LayerNorm(C)] [+ GELU]
#                    [+ residual add with optional 1x1x1 projection]
# ----------------------------------------------------------------------------
def _conv_im2col_kernel(*refs, KT, KH, KW, H, W, src_ch, src_pad, Cout,
                        H_BLK, apply_ln, apply_gelu, has_residual, use_proj):
    """One grid step = one (batch, t) output slice.

    src refs : (1, Tp, Hp, Wp, Cs)  bf16  pre-padded source volumes (full T window)
    w_ref    : (taps*CPT, Cout)     bf16  im2col weight, 128-aligned tap blocks
    b/g/bt   : (1, Cout)            f32   bias / LN gamma / LN beta
    r_ref    : (1, 1, H*W, Cres)    bf16  residual slice (optional)
    pw/pb    : (Cres, Cout)/(1,Cout)      residual 1x1x1 projection (optional)
    o_ref    : (1, 1, H*W, Cout)    f32
    patch    : (H_BLK*W, taps*CPT)  bf16  VMEM scratch (im2col patch)
    """
    n_src = len(src_ch)
    pos = 0
    src_refs = refs[pos:pos + n_src]; pos += n_src
    w_ref, b_ref, g_ref, bt_ref = refs[pos:pos + 4]; pos += 4
    r_ref = pw_ref = pb_ref = None
    if has_residual:
        r_ref = refs[pos]; pos += 1
        if use_proj:
            pw_ref, pb_ref = refs[pos:pos + 2]; pos += 2
    o_ref = refs[pos]; pos += 1
    patch_ref = refs[pos]

    t = pl.program_id(1)
    R = H_BLK * W
    CPT = sum(src_pad)

    # Zero the patch once per batch (t == 0 runs first on every core) so the
    # 128-aligned padding columns contribute exactly 0 to the big-K matmul.
    @pl.when(pl.program_id(1) == 0)
    def _zero_patch():
        patch_ref[...] = jnp.zeros_like(patch_ref)

    # Hoisted loop-invariant loads / broadcasts (JAX does not CSE
    # broadcast_in_dim, so do them once outside the chunk loop).
    w = w_ref[...]
    bias = jnp.broadcast_to(b_ref[...], (R, Cout))
    if apply_ln:
        gamma = jnp.broadcast_to(g_ref[...], (R, Cout))
        beta = jnp.broadcast_to(bt_ref[...], (R, Cout))
    if has_residual and use_proj:
        pw = pw_ref[...]
        pb = jnp.broadcast_to(pb_ref[...], (R, Cout))

    def chunk(h0):
        # --- im2col gather: one 128-aligned column block per tap per source ---
        for s in range(n_src):
            cs = src_ch[s]
            off_s = sum(src_pad[:s])
            tap = 0
            for kt in range(KT):
                for kh in range(KH):
                    for kw in range(KW):
                        sl = src_refs[s][0, pl.ds(t + kt, 1),
                                         pl.ds(h0 + kh, H_BLK),
                                         kw:kw + W, :]
                        col = tap * CPT + off_s
                        patch_ref[:, col:col + cs] = sl.reshape(R, cs)
                        tap += 1

        # --- single big-K MXU matmul, f32 accumulation ------------------------
        acc = jnp.dot(patch_ref[...], w, preferred_element_type=jnp.float32)
        acc = acc + bias

        if apply_ln:
            # LayerNorm over the channel dim (intended semantics of
            # norm_layer(out_channels) on a channels-last volume), eps = 1e-5.
            mean = jnp.mean(acc, axis=-1, keepdims=True)
            var = jnp.mean(jnp.square(acc - mean), axis=-1, keepdims=True)
            acc = (acc - mean) * jax.lax.rsqrt(var + _LN_EPS)
            acc = acc * gamma + beta

        if apply_gelu:
            if _GELU_TANH:
                c0 = math.sqrt(2.0 / math.pi)
                acc = 0.5 * acc * (1.0 + jnp.tanh(c0 * (acc + 0.044715 * acc * acc * acc)))
            else:
                acc = 0.5 * acc * (1.0 + jax.lax.erf(acc * (1.0 / math.sqrt(2.0))))

        if has_residual:
            r = r_ref[0, 0, pl.ds(h0 * W, R), :]
            if use_proj:
                r = jnp.dot(r, pw, preferred_element_type=jnp.float32) + pb
            else:
                r = r.astype(jnp.float32)
            acc = acc + r

        # TODO(synk): lane-sparse (R, Cout) store; lane-dense (H_BLK, W*Cout)
        # needs a sublane->lane shape-cast that Mosaic does not reliably lower.
        o_ref[0, 0, pl.ds(h0 * W, R), :] = acc

    n_chunks = H // H_BLK
    if n_chunks == 1:
        chunk(0)
    else:
        # visible loop keeps vreg live ranges flat for large H
        @pl.loop(0, n_chunks)
        def _chunks(c):
            chunk(c * H_BLK)


def conv3d_pallas(srcs_pad, src_ch, w2d, b, gamma, beta, *, KT, KH, KW, Cout,
                  apply_ln=False, apply_gelu=False,
                  residual=None, proj_w=None, proj_b=None):
    """'Same' conv on pre-padded channels-last volumes, fused epilogue.

    srcs_pad : list of (B, Tp, Hp, Wp, Cs) sources (e.g. [x_up, skip]) read
               straight into the im2col patch (no HBM concat).
    w2d      : (KT*KH*KW*CPT, Cout) weight with 128-aligned per-tap blocks.
    residual : optional (B, T, H, W, Cres), added after GELU, with optional
               1x1x1 projection (proj_w: (Cres, Cout), proj_b: (1, Cout)).
    Returns (B, T, H, W, Cout) float32.
    """
    B, Tp, Hp, Wp, _ = srcs_pad[0].shape
    T, H, W = Tp - KT + 1, Hp - KH + 1, Wp - KW + 1
    HW = H * W
    src_pad = tuple(_ceil_to(c, _LANE) for c in src_ch)
    CPT = sum(src_pad)
    Kp = KT * KH * KW * CPT
    assert w2d.shape == (Kp, Cout), (w2d.shape, Kp, Cout)
    has_residual = residual is not None
    use_proj = proj_w is not None
    Cres = residual.shape[-1] if has_residual else 0
    H_BLK = _pick_h_blk(H, W)
    R = H_BLK * W

    if gamma is None:
        gamma = jnp.zeros((1, Cout), jnp.float32)
    if beta is None:
        beta = jnp.zeros((1, Cout), jnp.float32)

    kernel = functools.partial(
        _conv_im2col_kernel, KT=KT, KH=KH, KW=KW, H=H, W=W,
        src_ch=tuple(src_ch), src_pad=src_pad, Cout=Cout, H_BLK=H_BLK,
        apply_ln=apply_ln, apply_gelu=apply_gelu,
        has_residual=has_residual, use_proj=use_proj)

    in_specs, args = [], []
    for s, cs in zip(srcs_pad, src_ch):
        in_specs.append(pl.BlockSpec((1, Tp, Hp, Wp, cs),
                                     lambda bb, tt: (bb, 0, 0, 0, 0)))
        args.append(s.astype(jnp.bfloat16))
    in_specs += [pl.BlockSpec((Kp, Cout), lambda bb, tt: (0, 0)),
                 pl.BlockSpec((1, Cout), lambda bb, tt: (0, 0)),
                 pl.BlockSpec((1, Cout), lambda bb, tt: (0, 0)),
                 pl.BlockSpec((1, Cout), lambda bb, tt: (0, 0))]
    args += [w2d.astype(jnp.bfloat16), b.astype(jnp.float32),
             gamma.astype(jnp.float32), beta.astype(jnp.float32)]
    if has_residual:
        in_specs.append(pl.BlockSpec((1, 1, HW, Cres),
                                     lambda bb, tt: (bb, tt, 0, 0)))
        # residual travels as bf16 (halves its HBM read); add stays f32 in-kernel
        args.append(residual.reshape(B, T, HW, Cres).astype(jnp.bfloat16))
        if use_proj:
            in_specs += [pl.BlockSpec((Cres, Cout), lambda bb, tt: (0, 0)),
                         pl.BlockSpec((1, Cout), lambda bb, tt: (0, 0))]
            args += [proj_w.astype(jnp.bfloat16), proj_b.astype(jnp.float32)]

    out = pl.pallas_call(
        kernel,
        out_shape=jax.ShapeDtypeStruct((B, T, HW, Cout), jnp.float32),
        grid=(B, T),
        in_specs=in_specs,
        out_specs=pl.BlockSpec((1, 1, HW, Cout), lambda bb, tt: (bb, tt, 0, 0)),
        scratch_shapes=[pltpu.VMEM((R, Kp), jnp.bfloat16)],
        compiler_params=pltpu.CompilerParams(
            # B is megacore-sharded; T is sequential so the index-map-constant
            # input blocks are fetched once per b and not duplicated per core.
            dimension_semantics=("parallel", "arbitrary"),
            # explicit cap (overrides per-chip scoped defaults); actual usage is
            # a few MiB at these shapes and leaves headroom in v7x's 64 MiB VMEM.
            vmem_limit_bytes=32 * 1024 * 1024),
    )(*args)
    return out.reshape(B, T, H, W, Cout)


# ----------------------------------------------------------------------------
# Parameter init (deterministic, PyTorch-default-style)
# ----------------------------------------------------------------------------
def _uniform(key, shape, fan_in):
    bound = 1.0 / math.sqrt(fan_in)
    return jax.random.uniform(key, shape, jnp.float32, -bound, bound)


def _pad_im2col_weight(w5d, src_ch):
    """(KT,KH,KW,Ctot,Cout) -> (taps*CPT, Cout): each source's channel block is
    zero-padded to a 128-lane multiple inside every tap block, matching the
    in-kernel patch layout (tap-major, 128-aligned column blocks)."""
    KT, KH, KW, Ctot, Cout = w5d.shape
    assert Ctot == sum(src_ch)
    taps = KT * KH * KW
    wf = w5d.reshape(taps, Ctot, Cout)
    blocks, c0 = [], 0
    for cs in src_ch:
        pad = _ceil_to(cs, _LANE) - cs
        blocks.append(jnp.pad(wf[:, c0:c0 + cs, :], ((0, 0), (0, pad), (0, 0))))
        c0 += cs
    wp = jnp.concatenate(blocks, axis=1)               # (taps, CPT, Cout)
    return wp.reshape(taps * wp.shape[1], Cout)


def _upsample_to_subpixel(up_w, up_b):
    """ConvTranspose(k=4,s=2,p=1) (weight parameterized as a forward conv over
    the zero-dilated, 2-padded input) == 1x3x3 'same' conv producing 4 phase
    channel blocks + 2x2 pixel shuffle.  Returns the equivalent 5-D weight."""
    _, _, _, cin, co = up_w.shape
    w_eq = jnp.zeros((1, 3, 3, cin, 4 * co), jnp.float32)
    for rh in range(2):
        for rw in range(2):
            p = (rh * 2 + rw) * co
            for a in range(2):
                for bb in range(2):
                    w_eq = w_eq.at[0, a + rh, bb + rw, :, p:p + co].set(
                        up_w[0, 2 * a + rh, 2 * bb + rw])
    return w_eq, jnp.tile(up_b, (1, 4))


def init_decoder_params(key, enc_channels, base_channels, num_stages,
                        channel_multiplier=None):
    if channel_multiplier is None:
        channel_multiplier = [2 ** (num_stages - 1 - i) for i in range(num_stages)]
    enc_rev = enc_channels[::-1]
    stages = []
    for i in range(num_stages):
        in_ch = enc_rev[0] if i == 0 else base_channels * channel_multiplier[i - 1]
        skip_ch = enc_rev[i + 1] if i + 1 < len(enc_rev) else 0
        out_ch = base_channels * channel_multiplier[i]
        fusion_ch = in_ch + skip_ch
        key, k1, k2, k3, k4, k5, k6 = jax.random.split(key, 7)
        use_proj = in_ch != out_ch
        up_w = _uniform(k1, (1, 4, 4, in_ch, in_ch), in_ch * 16)
        up_b = _uniform(k2, (1, in_ch), in_ch * 16)
        up_w5, up_b4 = _upsample_to_subpixel(up_w, up_b)
        fus_src = [in_ch, skip_ch] if skip_ch > 0 else [in_ch]
        fus_w = _uniform(k3, (3, 3, 3, fusion_ch, out_ch), fusion_ch * 27)
        stages.append({
            "in_ch": in_ch, "skip_ch": skip_ch, "out_ch": out_ch,
            "use_proj": use_proj, "fus_src": fus_src,
            "up_w2d": _pad_im2col_weight(up_w5, [in_ch]), "up_b": up_b4,
            "fus_w2d": _pad_im2col_weight(fus_w, fus_src),
            "fus_b": _uniform(k4, (1, out_ch), fusion_ch * 27),
            "fus_gamma": jnp.ones((1, out_ch), jnp.float32),
            "fus_beta": jnp.zeros((1, out_ch), jnp.float32),
            "proj_w": _uniform(k5, (in_ch, out_ch), in_ch) if use_proj else None,
            "proj_b": _uniform(k6, (1, out_ch), in_ch) if use_proj else None,
        })
    key, k1, k2 = jax.random.split(key, 3)
    c_last = base_channels * channel_multiplier[-1]
    fin_w = _uniform(k1, (3, 3, 3, c_last, base_channels), c_last * 27)
    return {
        "stages": stages,
        "final_w2d": _pad_im2col_weight(fin_w, [c_last]),
        "final_b": _uniform(k2, (1, base_channels), c_last * 27),
        "final_gamma": jnp.ones((1, base_channels), jnp.float32),
        "final_beta": jnp.zeros((1, base_channels), jnp.float32),
    }


# ----------------------------------------------------------------------------
# Forward pass (mirrors DecoderBlock / EventMambaDecoder.forward)
# ----------------------------------------------------------------------------
def decoder_block_forward(p, x, skip):
    """x: (B, T, H, W, Cin) channels-last, float32."""
    B, T, H, W, Cin = x.shape
    residual = x

    # upsample: ConvTranspose(k=4,s=2,p=1) over (H, W), T unchanged, as a
    # sub-pixel 1x3x3 conv + pixel shuffle (exact rewrite).
    # TODO(synk): create_upsample_block is not given in the reference; assumed
    #             spatial-only transposed conv with bias.
    # TODO(synk): fold the pixel shuffle into the kernel's store (saves one
    #             HBM relayout per stage).
    xp = jnp.pad(x, ((0, 0), (0, 0), (1, 1), (1, 1), (0, 0)))
    y = conv3d_pallas([xp], [Cin], p["up_w2d"], p["up_b"], None, None,
                      KT=1, KH=3, KW=3, Cout=4 * Cin)
    y = y.reshape(B, T, H, W, 2, 2, Cin)
    x = jnp.transpose(y, (0, 1, 2, 4, 3, 5, 6)).reshape(B, T, 2 * H, 2 * W, Cin)
    Hn, Wn = 2 * H, 2 * W

    # residual -> F.interpolate(..., mode='trilinear', align_corners=False)
    residual = jax.image.resize(residual, (B, T, Hn, Wn, Cin), method="trilinear")

    srcs, chans = [x], [Cin]
    if skip is not None:
        if skip.shape[1:4] != (T, Hn, Wn):
            skip = jax.image.resize(skip, (B, T, Hn, Wn, skip.shape[-1]),
                                    method="trilinear")
        srcs.append(skip)
        chans.append(skip.shape[-1])

    # fusion Conv3d(k=3, p=1) + LayerNorm(C) + GELU.  torch.cat([x, skip]) is
    # replaced by feeding both sources straight into the im2col patch, and the
    # residual (+ optional 1x1x1 projection) add is fused into the epilogue.
    # TODO(synk): RWOMamba / HSFCMamba are not defined in the provided source;
    #             treated as identity pass-throughs.
    # TODO(synk): the halo jnp.pad still runs in the wrapper (in-kernel halos
    #             are a follow-up).
    srcs_p = [jnp.pad(s, ((0, 0), (1, 1), (1, 1), (1, 1), (0, 0))) for s in srcs]
    x = conv3d_pallas(srcs_p, chans, p["fus_w2d"], p["fus_b"],
                      p["fus_gamma"], p["fus_beta"],
                      KT=3, KH=3, KW=3, Cout=p["out_ch"],
                      apply_ln=True, apply_gelu=True,
                      residual=residual,
                      proj_w=p["proj_w"] if p["use_proj"] else None,
                      proj_b=p["proj_b"] if p["use_proj"] else None)
    return x


def decoder_forward(params, x, encoder_features):
    """x: (B, C, T, H, W) NCDHW; encoder_features: list of NCDHW (encoder order)."""
    x = jnp.transpose(x, (0, 2, 3, 4, 1)).astype(jnp.float32)
    feats = [jnp.transpose(f, (0, 2, 3, 4, 1)).astype(jnp.float32)
             for f in encoder_features][::-1]
    for i, sp in enumerate(params["stages"]):
        skip = feats[i] if i < len(feats) else None
        x = decoder_block_forward(sp, x, skip)
    # final_proj: Conv3d(k=3, p=1) + LayerNorm(base) + GELU
    c_last = x.shape[-1]
    xp = jnp.pad(x, ((0, 0), (1, 1), (1, 1), (1, 1), (0, 0)))
    x = conv3d_pallas([xp], [c_last], params["final_w2d"], params["final_b"],
                      params["final_gamma"], params["final_beta"],
                      KT=3, KH=3, KW=3, Cout=params["final_b"].shape[-1],
                      apply_ln=True, apply_gelu=True)
    return jnp.transpose(x, (0, 4, 1, 2, 3))  # back to (B, C, T, H, W)


# ----------------------------------------------------------------------------
if __name__ == "__main__":
    key = jax.random.PRNGKey(0)
    kp, kx, k0, k1 = jax.random.split(key, 4)

    enc_channels = [4, 8, 16]   # encoder channels, shallow -> deep (deepest = bottleneck)
    base_channels = 8
    num_stages = 2

    params = init_decoder_params(kp, enc_channels, base_channels, num_stages)

    B, T = 2, 2
    x = jax.random.normal(kx, (B, enc_channels[-1], T, 4, 4), jnp.float32)    # bottleneck
    f0 = jax.random.normal(k0, (B, enc_channels[0], T, 16, 16), jnp.float32)  # shallow skip
    f1 = jax.random.normal(k1, (B, enc_channels[1], T, 8, 8), jnp.float32)    # deeper skip

    out = decoder_forward(params, x, [f0, f1])
    out = jax.block_until_ready(out)
    assert out.shape == (B, base_channels, T, 16, 16), out.shape
    assert bool(jnp.all(jnp.isfinite(out)))
    print("KERNEL_OK")
</pallas_src>

<mosaic_0001>
module attributes {stable_mosaic.version = 11 : i64} {
  func.func @_conv_im2col_kernel(%arg0: i32, %arg1: i32, %arg2: memref<1x2x6x6x16xbf16, #tpu.memory_space<vmem>>, %arg3: memref<1152x64xbf16, #tpu.memory_space<vmem>>, %arg4: memref<1x64xf32, #tpu.memory_space<vmem>>, %arg5: memref<1x64xf32, #tpu.memory_space<vmem>>, %arg6: memref<1x64xf32, #tpu.memory_space<vmem>>, %arg7: memref<1x1x16x64xf32, #tpu.memory_space<vmem>>, %arg8: memref<16x1152xbf16, #tpu.memory_space<vmem>>) attributes {dimension_semantics = [#tpu.dimension_semantics<parallel>, #tpu.dimension_semantics<arbitrary>], iteration_bounds = array<i64: 2, 2>, scalar_prefetch = 0 : i64, scratch_operands = 1 : i64, tpu.core_type = #tpu.core_type<tc>, window_params = [{transform_indices = @transform_0, window_bounds = array<i64: 1, 2, 6, 6, 16>}, {pipeline_mode = #tpu.pipeline_mode<synchronous>, transform_indices = @transform_1, window_bounds = array<i64: 1152, 64>}, {pipeline_mode = #tpu.pipeline_mode<synchronous>, transform_indices = @transform_2, window_bounds = array<i64: 1, 64>}, {pipeline_mode = #tpu.pipeline_mode<synchronous>, transform_indices = @transform_3, window_bounds = array<i64: 1, 64>}, {pipeline_mode = #tpu.pipeline_mode<synchronous>, transform_indices = @transform_4, window_bounds = array<i64: 1, 64>}, {transform_indices = @transform_5, window_bounds = array<i64: 1, 1, 16, 64>}]} {
    %c0_i32 = arith.constant 0 : i32
    %0 = arith.cmpi eq, %arg1, %c0_i32 : i32
    %1 = arith.extui %0 : i1 to i32
    %c0_i32_0 = arith.constant 0 : i32
    %2 = arith.cmpi ne, %1, %c0_i32_0 : i32
    scf.if %2 {
      %cst_63 = arith.constant 0.000000e+00 : bf16
      %67 = vector.broadcast %cst_63 : bf16 to vector<16x1152xbf16>
      %c0_64 = arith.constant 0 : index
      %c0_65 = arith.constant 0 : index
      %68 = vector.load %arg8[%c0_64, %c0_65] : memref<16x1152xbf16, #tpu.memory_space<vmem>>, vector<16x1152xbf16>
      tpu.vector_store %arg8[%c0_64, %c0_65], %67 {strides = array<i32>} : memref<16x1152xbf16, #tpu.memory_space<vmem>>, vector<16x1152xbf16>,
    } else {
    }
    %c0 = arith.constant 0 : index
    %c0_1 = arith.constant 0 : index
    %3 = vector.load %arg3[%c0, %c0_1] : memref<1152x64xbf16, #tpu.memory_space<vmem>>, vector<1152x64xbf16>
    %c0_2 = arith.constant 0 : index
    %c0_3 = arith.constant 0 : index
    %4 = vector.load %arg4[%c0_2, %c0_3] : memref<1x64xf32, #tpu.memory_space<vmem>>, vector<1x64xf32>
    %5 = vector.shape_cast %4 : vector<1x64xf32> to vector<1x64xf32>
    %6 = vector.broadcast %5 : vector<1x64xf32> to vector<16x64xf32>
    %c0_i32_4 = arith.constant 0 : i32
    %7 = arith.addi %arg1, %c0_i32_4 : i32
    %c0_5 = arith.constant 0 : index
    %8 = arith.index_cast %7 : i32 to index
    %c0_6 = arith.constant 0 : index
    %c0_7 = arith.constant 0 : index
    %c0_8 = arith.constant 0 : index
    %9 = vector.load %arg2[%c0_5, %8, %c0_6, %c0_7, %c0_8] : memref<1x2x6x6x16xbf16, #tpu.memory_space<vmem>>, vector<1x1x4x4x16xbf16>
    %10 = vector.shape_cast %9 : vector<1x1x4x4x16xbf16> to vector<1x4x4x16xbf16>
    %11 = vector.shape_cast %10 : vector<1x4x4x16xbf16> to vector<16x16xbf16>
    %c0_9 = arith.constant 0 : index
    %c0_10 = arith.constant 0 : index
    %12 = vector.load %arg8[%c0_9, %c0_10] : memref<16x1152xbf16, #tpu.memory_space<vmem>>, vector<16x16xbf16>
    tpu.vector_store %arg8[%c0_9, %c0_10], %11 {strides = array<i32>} : memref<16x1152xbf16, #tpu.memory_space<vmem>>, vector<16x16xbf16>,
    %c0_i32_11 = arith.constant 0 : i32
    %13 = arith.addi %arg1, %c0_i32_11 : i32
    %c0_12 = arith.constant 0 : index
    %14 = arith.index_cast %13 : i32 to index
    %c0_13 = arith.constant 0 : index
    %c1 = arith.constant 1 : index
    %c0_14 = arith.constant 0 : index
    %15 = vector.load %arg2[%c0_12, %14, %c0_13, %c1, %c0_14] : memref<1x2x6x6x16xbf16, #tpu.memory_space<vmem>>, vector<1x1x4x4x16xbf16>
    %16 = vector.shape_cast %15 : vector<1x1x4x4x16xbf16> to vector<1x4x4x16xbf16>
    %17 = vector.shape_cast %16 : vector<1x4x4x16xbf16> to vector<16x16xbf16>
    %c0_15 = arith.constant 0 : index
    %c128 = arith.constant 128 : index
    %18 = vector.load %arg8[%c0_15, %c128] : memref<16x1152xbf16, #tpu.memory_space<vmem>>, vector<16x16xbf16>
    tpu.vector_store %arg8[%c0_15, %c128], %17 {strides = array<i32>} : memref<16x1152xbf16, #tpu.memory_space<vmem>>, vector<16x16xbf16>,
    %c0_i32_16 = arith.constant 0 : i32
    %19 = arith.addi %arg1, %c0_i32_16 : i32
    %c0_17 = arith.constant 0 : index
    %20 = arith.index_cast %19 : i32 to index
    %c0_18 = arith.constant 0 : index
    %c2 = arith.constant 2 : index
    %c0_19 = arith.constant 0 : index
    %21 = vector.load %arg2[%c0_17, %20, %c0_18, %c2, %c0_19] : memref<1x2x6x6x16xbf16, #tpu.memory_space<vmem>>, vector<1x1x4x4x16xbf16>
    %22 = vector.shape_cast %21 : vector<1x1x4x4x16xbf16> to vector<1x4x4x16xbf16>
    %23 = vector.shape_cast %22 : vector<1x4x4x16xbf16> to vector<16x16xbf16>
    %c0_20 = arith.constant 0 : index
    %c256 = arith.constant 256 : index
    %24 = vector.load %arg8[%c0_20, %c256] : memref<16x1152xbf16, #tpu.memory_space<vmem>>, vector<16x16xbf16>
    tpu.vector_store %arg8[%c0_20, %c256], %23 {strides = array<i32>} : memref<16x1152xbf16, #tpu.memory_space<vmem>>, vector<16x16xbf16>,
    %c0_i32_21 = arith.constant 0 : i32
    %25 = arith.addi %arg1, %c0_i32_21 : i32
    %c0_22 = arith.constant 0 : index
    %26 = arith.index_cast %25 : i32 to index
    %c1_23 = arith.constant 1 : index
    %c0_24 = arith.constant 0 : index
    %c0_25 = arith.constant 0 : index
    %27 = vector.load %arg2[%c0_22, %26, %c1_23, %c0_24, %c0_25] : memref<1x2x6x6x16xbf16, #tpu.memory_space<vmem>>, vector<1x1x4x4x16xbf16>
    %28 = vector.shape_cast %27 : vector<1x1x4x4x16xbf16> to vector<1x4x4x16xbf16>
    %29 = vector.shape_cast %28 : vector<1x4x4x16xbf16> to vector<16x16xbf16>
    %c0_26 = arith.constant 0 : index
    %c384 = arith.constant 384 : index
    %30 = vector.load %arg8[%c0_26, %c384] : memref<16x1152xbf16, #tpu.memory_space<vmem>>, vector<16x16xbf16>
    tpu.vector_store %arg8[%c0_26, %c384], %29 {strides = array<i32>} : memref<16x1152xbf16, #tpu.memory_space<vmem>>, vector<16x16xbf16>,
    %c0_i32_27 = arith.constant 0 : i32
    %31 = arith.addi %arg1, %c0_i32_27 : i32
    %c0_28 = arith.constant 0 : index
    %32 = arith.index_cast %31 : i32 to index
    %c1_29 = arith.constant 1 : index
    %c1_30 = arith.constant 1 : index
    %c0_31 = arith.constant 0 : index
    %33 = vector.load %arg2[%c0_28, %32, %c1_29, %c1_30, %c0_31] : memref<1x2x6x6x16xbf16, #tpu.memory_space<vmem>>, vector<1x1x4x4x16xbf16>
    %34 = vector.shape_cast %33 : vector<1x1x4x4x16xbf16> to vector<1x4x4x16xbf16>
    %35 = vector.shape_cast %34 : vector<1x4x4x16xbf16> to vector<16x16xbf16>
    %c0_32 = arith.constant 0 : index
    %c512 = arith.constant 512 : index
    %36 = vector.load %arg8[%c0_32, %c512] : memref<16x1152xbf16, #tpu.memory_space<vmem>>, vector<16x16xbf16>
    tpu.vector_store %arg8[%c0_32, %c512], %35 {strides = array<i32>} : memref<16x1152xbf16, #tpu.memory_space<vmem>>, vector<16x16xbf16>,
    %c0_i32_33 = arith.constant 0 : i32
    %37 = arith.addi %arg1, %c0_i32_33 : i32
    %c0_34 = arith.constant 0 : index
    %38 = arith.index_cast %37 : i32 to index
    %c1_35 = arith.constant 1 : index
    %c2_36 = arith.constant 2 : index
    %c0_37 = arith.constant 0 : index
    %39 = vector.load %arg2[%c0_34, %38, %c1_35, %c2_36, %c0_37] : memref<1x2x6x6x16xbf16, #tpu.memory_space<vmem>>, vector<1x1x4x4x16xbf16>
    %40 = vector.shape_cast %39 : vector<1x1x4x4x16xbf16> to vector<1x4x4x16xbf16>
    %41 = vector.shape_cast %40 : vector<1x4x4x16xbf16> to vector<16x16xbf16>
    %c0_38 = arith.constant 0 : index
    %c640 = arith.constant 640 : index
    %42 = vector.load %arg8[%c0_38, %c640] : memref<16x1152xbf16, #tpu.memory_space<vmem>>, vector<16x16xbf16>
    tpu.vector_store %arg8[%c0_38, %c640], %41 {strides = array<i32>} : memref<16x1152xbf16, #tpu.memory_space<vmem>>, vector<16x16xbf16>,
    %c0_i32_39 = arith.constant 0 : i32
    %43 = arith.addi %arg1, %c0_i32_39 : i32
    %c0_40 = arith.constant 0 : index
    %44 = arith.index_cast %43 : i32 to index
    %c2_41 = arith.constant 2 : index
    %c0_42 = arith.constant 0 : index
    %c0_43 = arith.constant 0 : index
    %45 = vector.load %arg2[%c0_40, %44, %c2_41, %c0_42, %c0_43] : memref<1x2x6x6x16xbf16, #tpu.memory_space<vmem>>, vector<1x1x4x4x16xbf16>
    %46 = vector.shape_cast %45 : vector<1x1x4x4x16xbf16> to vector<1x4x4x16xbf16>
    %47 = vector.shape_cast %46 : vector<1x4x4x16xbf16> to vector<16x16xbf16>
    %c0_44 = arith.constant 0 : index
    %c768 = arith.constant 768 : index
    %48 = vector.load %arg8[%c0_44, %c768] : memref<16x1152xbf16, #tpu.memory_space<vmem>>, vector<16x16xbf16>
    tpu.vector_store %arg8[%c0_44, %c768], %47 {strides = array<i32>} : memref<16x1152xbf16, #tpu.memory_space<vmem>>, vector<16x16xbf16>,
    %c0_i32_45 = arith.constant 0 : i32
    %49 = arith.addi %arg1, %c0_i32_45 : i32
    %c0_46 = arith.constant 0 : index
    %50 = arith.index_cast %49 : i32 to index
    %c2_47 = arith.constant 2 : index
    %c1_48 = arith.constant 1 : index
    %c0_49 = arith.constant 0 : index
    %51 = vector.load %arg2[%c0_46, %50, %c2_47, %c1_48, %c0_49] : memref<1x2x6x6x16xbf16, #tpu.memory_space<vmem>>, vector<1x1x4x4x16xbf16>
    %52 = vector.shape_cast %51 : vector<1x1x4x4x16xbf16> to vector<1x4x4x16xbf16>
    %53 = vector.shape_cast %52 : vector<1x4x4x16xbf16> to vector<16x16xbf16>
    %c0_50 = arith.constant 0 : index
    %c896 = arith.constant 896 : index
    %54 = vector.load %arg8[%c0_50, %c896] : memref<16x1152xbf16, #tpu.memory_space<vmem>>, vector<16x16xbf16>
    tpu.vector_store %arg8[%c0_50, %c896], %53 {strides = array<i32>} : memref<16x1152xbf16, #tpu.memory_space<vmem>>, vector<16x16xbf16>,
    %c0_i32_51 = arith.constant 0 : i32
    %55 = arith.addi %arg1, %c0_i32_51 : i32
    %c0_52 = arith.constant 0 : index
    %56 = arith.index_cast %55 : i32 to index
    %c2_53 = arith.constant 2 : index
    %c2_54 = arith.constant 2 : index
    %c0_55 = arith.constant 0 : index
    %57 = vector.load %arg2[%c0_52, %56, %c2_53, %c2_54, %c0_55] : memref<1x2x6x6x16xbf16, #tpu.memory_space<vmem>>, vector<1x1x4x4x16xbf16>
    %58 = vector.shape_cast %57 : vector<1x1x4x4x16xbf16> to vector<1x4x4x16xbf16>
    %59 = vector.shape_cast %58 : vector<1x4x4x16xbf16> to vector<16x16xbf16>
    %c0_56 = arith.constant 0 : index
    %c1024 = arith.constant 1024 : index
    %60 = vector.load %arg8[%c0_56, %c1024] : memref<16x1152xbf16, #tpu.memory_space<vmem>>, vector<16x16xbf16>
    tpu.vector_store %arg8[%c0_56, %c1024], %59 {strides = array<i32>} : memref<16x1152xbf16, #tpu.memory_space<vmem>>, vector<16x16xbf16>,
    %c0_57 = arith.constant 0 : index
    %c0_58 = arith.constant 0 : index
    %61 = vector.load %arg8[%c0_57, %c0_58] : memref<16x1152xbf16, #tpu.memory_space<vmem>>, vector<16x1152xbf16>
    %cst = arith.constant dense<0.000000e+00> : vector<16x64xf32>
    %62 = tpu.matmul %61, %3, %cst {dimension_numbers = #tpu.dot_dimension_numbers<[1], [0], [0], [1], [0, 0, 1, 1], [], []>} : vector<16x1152xbf16>, vector<1152x64xbf16>, vector<16x64xf32> -> vector<16x64xf32>
    %63 = arith.addf %62, %6 : vector<16x64xf32>
    %c0_59 = arith.constant 0 : index
    %c0_60 = arith.constant 0 : index
    %c0_61 = arith.constant 0 : index
    %c0_62 = arith.constant 0 : index
    %64 = vector.load %arg7[%c0_59, %c0_60, %c0_61, %c0_62] : memref<1x1x16x64xf32, #tpu.memory_space<vmem>>, vector<1x1x16x64xf32>
    %65 = vector.shape_cast %64 : vector<1x1x16x64xf32> to vector<16x64xf32>
    %66 = vector.shape_cast %63 : vector<16x64xf32> to vector<1x1x16x64xf32>
    tpu.vector_store %arg7[%c0_59, %c0_60, %c0_61, %c0_62], %66 {strides = array<i32>} : memref<1x1x16x64xf32, #tpu.memory_space<vmem>>, vector<1x1x16x64xf32>,
    return
  }
  func.func @transform_0(%arg0: i32, %arg1: i32) -> (i32, i32, i32, i32, i32) {
    %c0_i32 = arith.constant 0 : i32
    %c0_i32_0 = arith.constant 0 : i32
    %c0_i32_1 = arith.constant 0 : i32
    %c0_i32_2 = arith.constant 0 : i32
    %c0_i32_3 = arith.constant 0 : i32
    return %arg0, %c0_i32, %c0_i32_0, %c0_i32_1, %c0_i32_2 : i32, i32, i32, i32, i32
  }
  func.func @transform_1(%arg0: i32, %arg1: i32) -> (i32, i32) {
    %c0_i32 = arith.constant 0 : i32
    %c0_i32_0 = arith.constant 0 : i32
    %c0_i32_1 = arith.constant 0 : i32
    return %c0_i32, %c0_i32_0 : i32, i32
  }
  func.func @transform_2(%arg0: i32, %arg1: i32) -> (i32, i32) {
    %c0_i32 = arith.constant 0 : i32
    %c0_i32_0 = arith.constant 0 : i32
    %c0_i32_1 = arith.constant 0 : i32
    return %c0_i32, %c0_i32_0 : i32, i32
  }
  func.func @transform_3(%arg0: i32, %arg1: i32) -> (i32, i32) {
    %c0_i32 = arith.constant 0 : i32
    %c0_i32_0 = arith.constant 0 : i32
    %c0_i32_1 = arith.constant 0 : i32
    return %c0_i32, %c0_i32_0 : i32, i32
  }
  func.func @transform_4(%arg0: i32, %arg1: i32) -> (i32, i32) {
    %c0_i32 = arith.constant 0 : i32
    %c0_i32_0 = arith.constant 0 : i32
    %c0_i32_1 = arith.constant 0 : i32
    return %c0_i32, %c0_i32_0 : i32, i32
  }
  func.func @transform_5(%arg0: i32, %arg1: i32) -> (i32, i32, i32, i32) {
    %c0_i32 = arith.constant 0 : i32
    %c0_i32_0 = arith.constant 0 : i32
    %c0_i32_1 = arith.constant 0 : i32
    return %arg0, %arg1, %c0_i32, %c0_i32_0 : i32, i32, i32, i32
  }
}

</mosaic_0001>

<llo_original>
// kernel: tpu_custom_call.1
$region0: #{tpu_custom_call.1}
  #allocation0 [shape = 'u32[]', space=smem, size = 0x4, offset = 0x4, fixed_abs, tag = 'smem constant byte address 0x4 - core index']
  #allocation1 [shape = 'u32[144,128]{1,0:T(1,128)}', space=vmem, size = 0x12000, scoped, tag = 'internal scratch']
  #allocation2 [shape = 'bf16[16,1152]{1,0:T(16,128)(2,1)}', space=vmem, size = 0x9000, scoped, tag = 'scratch operand']
  %s0 = inlined_call_operand.vmem [shape: bf16[2,2,6,6,16], index: 0, kind: input, shape index: {}]
  %s1 = inlined_call_operand.vmem [shape: bf16[1152,64], index: 1, kind: input, shape index: {}]
  %s2 = inlined_call_operand.vmem [shape: f32[1,64], index: 2, kind: input, shape index: {}]
  %s3 = inlined_call_operand.vmem [shape: f32[1,64], index: 3, kind: input, shape index: {}]
  %s4 = inlined_call_operand.vmem [shape: f32[1,64], index: 4, kind: input, shape index: {}]
  %s5 = inlined_call_operand.hbm [shape: f32[2,2,16,64], index: 5, kind: output, shape index: {}]
  %s6 = sld [smem:[#allocation0]]
  $region57: #{tpu_custom_call.1} parent=0
    _
  %s8 = ssub.s32 1, %s6
  %s9 = scalar_select 0, %s8, %s6
  $region1: #{tpu_custom_call.1} parent=0
    #allocation3 [shape = 'u8[16384]{0}', space=vmem, size = 0x4000, scoped, tag = 'output window, operand 0']
    #allocation4 [shape = 's32[2]{0}', space=sflag, size = 0x8, scoped, tag = 'scoped memory for tpu_custom_call.1']
    %10 = vsyncpa [#allocation4], 0
    %s11 = scalar_lea.sflag [#allocation4], 1
    %12 = vsyncpa %s11, 0
    loop: start=0, step=1, limit=6
    $region2: #{tpu_custom_call.1} parent=1 // loop_pre_header
      _
    $region3: #{tpu_custom_call.1} parent=1 // loop_header
      %s14 = sphi 0, %s18
      %p15 = scmp.ge.s32.totalorder %s14, 6
      %s21 = sphi 0, %s33
      %s22 = sphi 0, %s29
      %s23 = sphi 0, %s21
      %s24 = sphi 0, %s22
      %s25 = sphi 0, %s23
      %s26 = sphi 0, %s24
      %s36 = sphi 0, %s38
      %s39 = sphi 0, %s36
      %s40 = sphi 0, %s39
      %s56 = sphi 0, %s40
      %s60 = sphi 0, %s60
      %s62 = sphi 0, %s60
      %s63 = sphi 0, %s62
      %s77 = sphi 0, %s63
      %s81 = sphi 0, %s81
      %s83 = sphi 0, %s81
      %s84 = sphi 0, %s83
      %s98 = sphi 0, %s84
      %s102 = sphi 0, %s102
      %s104 = sphi 0, %s102
      %s105 = sphi 0, %s104
      %s119 = sphi 0, %s105
      %s123 = sphi 0, %s123
      %s125 = sphi 0, %s123
      %s126 = sphi 0, %s125
      %s140 = sphi 0, %s126
      %s148 = sphi 0, %s150
      %s151 = sphi 0, %s148
      %s152 = sphi 0, %s151
      %s168 = sphi 0, %s152
    $region4: #{tpu_custom_call.1} parent=1 // loop_header_branch
      %17 = sbr.rel (%p15) target = $region8
    $region5: #{tpu_custom_call.1} parent=1 // loop_body
      %s19 = ssub.s32 %s14, 1
      %s20 = ssub.s32 %s14, 2
      %s27 = sadd.s32 1, %s22
      %p28 = scmp.ge.s32.totalorder %s27, 2
      %s29 = scalar_select %p28, 0, %s27
      %s30 = sadd.s32 1, %s21
      %s31 = scalar_select %p28, %s30, %s21
      %p32 = scmp.ge.s32.totalorder %s31, 2
      %s33 = scalar_select %p32, 0, %s31
      %s34 = ssub.s32 %s21, %s33
      %p35 = scmp.eq.s32.totalorder %s34, 0
      %s37 = sadd.s32 %s36, 1
      %s38 = scalar_select %p35, %s36, %s37
      %p41 = pneg %p35
      %p42 = scmp.eq.s32.totalorder %s14, 3
      %p43 = por %p41, %p42
      %p44 = scmp.ne.s32.totalorder %s36, %s39
      %p45 = scmp.eq.s32.totalorder %s14, 0
      %p46 = por %p44, %p45
      %p47 = scmp.ne.s32.totalorder %s36, %s39
      %p48 = scmp.eq.s32.totalorder %s19, 3
      %p49 = por %p47, %p48
      %p50 = scmp.ne.s32.totalorder %s39, %s40
      %p51 = scmp.eq.s32.totalorder %s19, 0
      %p52 = por %p50, %p51
      %p53 = scmp.ne.s32.totalorder %s39, %s40
      %p54 = scmp.eq.s32.totalorder %s20, 3
      %p55 = por %p53, %p54
      %p57 = scmp.ne.s32.totalorder %s40, %s56
      %p58 = scmp.eq.s32.totalorder %s20, 0
      %p59 = por %p57, %p58
      %s61 = sadd.s32 %s60, 1
      %p64 = scmp.eq.s32.totalorder %s14, 3
      %p65 = scmp.ne.s32.totalorder %s60, %s62
      %p66 = scmp.eq.s32.totalorder %s14, 0
      %p67 = por %p65, %p66
      %p68 = scmp.ne.s32.totalorder %s60, %s62
      %p69 = scmp.eq.s32.totalorder %s19, 3
      %p70 = por %p68, %p69
      %p71 = scmp.ne.s32.totalorder %s62, %s63
      %p72 = scmp.eq.s32.totalorder %s19, 0
      %p73 = por %p71, %p72
      %p74 = scmp.ne.s32.totalorder %s62, %s63
      %p75 = scmp.eq.s32.totalorder %s20, 3
      %p76 = por %p74, %p75
      %p78 = scmp.ne.s32.totalorder %s63, %s77
      %p79 = scmp.eq.s32.totalorder %s20, 0
      %p80 = por %p78, %p79
      %s82 = sadd.s32 %s81, 1
      %p85 = scmp.eq.s32.totalorder %s14, 3
      %p86 = scmp.ne.s32.totalorder %s81, %s83
      %p87 = scmp.eq.s32.totalorder %s14, 0
      %p88 = por %p86, %p87
      %p89 = scmp.ne.s32.totalorder %s81, %s83
      %p90 = scmp.eq.s32.totalorder %s19, 3
      %p91 = por %p89, %p90
      %p92 = scmp.ne.s32.totalorder %s83, %s84
      %p93 = scmp.eq.s32.totalorder %s19, 0
      %p94 = por %p92, %p93
      %p95 = scmp.ne.s32.totalorder %s83, %s84
      %p96 = scmp.eq.s32.totalorder %s20, 3
      %p97 = por %p95, %p96
      %p99 = scmp.ne.s32.totalorder %s84, %s98
      %p100 = scmp.eq.s32.totalorder %s20, 0
      %p101 = por %p99, %p100
      %s103 = sadd.s32 %s102, 1
      %p106 = scmp.eq.s32.totalorder %s14, 3
      %p107 = scmp.ne.s32.totalorder %s102, %s104
      %p108 = scmp.eq.s32.totalorder %s14, 0
      %p109 = por %p107, %p108
      %p110 = scmp.ne.s32.totalorder %s102, %s104
      %p111 = scmp.eq.s32.totalorder %s19, 3
      %p112 = por %p110, %p111
      %p113 = scmp.ne.s32.totalorder %s104, %s105
      %p114 = scmp.eq.s32.totalorder %s19, 0
      %p115 = por %p113, %p114
      %p116 = scmp.ne.s32.totalorder %s104, %s105
      %p117 = scmp.eq.s32.totalorder %s20, 3
      %p118 = por %p116, %p117
      %p120 = scmp.ne.s32.totalorder %s105, %s119
      %p121 = scmp.eq.s32.totalorder %s20, 0
      %p122 = por %p120, %p121
      %s124 = sadd.s32 %s123, 1
      %p127 = scmp.eq.s32.totalorder %s14, 3
      %p128 = scmp.ne.s32.totalorder %s123, %s125
      %p129 = scmp.eq.s32.totalorder %s14, 0
      %p130 = por %p128, %p129
      %p131 = scmp.ne.s32.totalorder %s123, %s125
      %p132 = scmp.eq.s32.totalorder %s19, 3
      %p133 = por %p131, %p132
      %p134 = scmp.ne.s32.totalorder %s125, %s126
      %p135 = scmp.eq.s32.totalorder %s19, 0
      %p136 = por %p134, %p135
      %p137 = scmp.ne.s32.totalorder %s125, %s126
      %p138 = scmp.eq.s32.totalorder %s20, 3
      %p139 = por %p137, %p138
      %p141 = scmp.ne.s32.totalorder %s126, %s140
      %p142 = scmp.eq.s32.totalorder %s20, 0
      %p143 = por %p141, %p142
      %s144 = ssub.s32 %s21, %s33
      %s145 = ssub.s32 %s22, %s29
      %s146 = sor.u32 %s144, %s145
      %p147 = scmp.eq.s32.totalorder %s146, 0
      %s149 = sadd.s32 %s148, 1
      %s150 = scalar_select %p147, %s148, %s149
      %p153 = pneg %p147
      %p154 = scmp.eq.s32.totalorder %s14, 3
      %p155 = por %p153, %p154
      %p156 = scmp.ne.s32.totalorder %s148, %s151
      %p157 = scmp.eq.s32.totalorder %s14, 0
      %p158 = por %p156, %p157
      %p159 = scmp.ne.s32.totalorder %s148, %s151
      %p160 = scmp.eq.s32.totalorder %s19, 3
      %p161 = por %p159, %p160
      %p162 = scmp.ne.s32.totalorder %s151, %s152
      %p163 = scmp.eq.s32.totalorder %s19, 0
      %p164 = por %p162, %p163
      %p165 = scmp.ne.s32.totalorder %s151, %s152
      %p166 = scmp.eq.s32.totalorder %s20, 3
      %p167 = por %p165, %p166
      %p169 = scmp.ne.s32.totalorder %s152, %s168
      %p170 = scmp.eq.s32.totalorder %s20, 0
      %p171 = por %p169, %p170
      %p172 = scmp.le.s32.totalorder 1, %s14
      %p173 = scmp.lt.s32.totalorder %s14, 5
      %p174 = pnand %p172, %p173
      %p175 = pneg %p174
      // Predicated region
      $region9: #{tpu_custom_call.1} parent=5 // pred_check
        _
      $region10: #{tpu_custom_call.1} parent=5 // pred_check_branch
        %177 = sbr.rel (%p174) target = $region12
      $region11: #{tpu_custom_call.1} parent=5 // pred_region
        %s178 = ssub.s32 %s14, 1
        // Predicated region
        $region13: #{tpu_custom_call.1} parent=11 // pred_check
          %p179 = pneg %p73
        $region14: #{tpu_custom_call.1} parent=11 // pred_check_branch
          %181 = sbr.rel (%p179) target = $region16
        $region15: #{tpu_custom_call.1} parent=11 // pred_region
          _
        $region16: #{tpu_custom_call.1} parent=11 // pred_fallthru
          _
        // Predicated region
        $region17: #{tpu_custom_call.1} parent=11 // pred_check
          %p182 = pneg %p94
        $region18: #{tpu_custom_call.1} parent=11 // pred_check_branch
          %184 = sbr.rel (%p182) target = $region20
        $region19: #{tpu_custom_call.1} parent=11 // pred_region
          _
        $region20: #{tpu_custom_call.1} parent=11 // pred_fallthru
          _
        // Predicated region
        $region21: #{tpu_custom_call.1} parent=11 // pred_check
          %p185 = pneg %p115
        $region22: #{tpu_custom_call.1} parent=11 // pred_check_branch
          %187 = sbr.rel (%p185) target = $region24
        $region23: #{tpu_custom_call.1} parent=11 // pred_region
          _
        $region24: #{tpu_custom_call.1} parent=11 // pred_fallthru
          _
        // Predicated region
        $region25: #{tpu_custom_call.1} parent=11 // pred_check
          %p188 = pneg %p136
        $region26: #{tpu_custom_call.1} parent=11 // pred_check_branch
          %190 = sbr.rel (%p188) target = $region28
        $region27: #{tpu_custom_call.1} parent=11 // pred_region
          _
        $region28: #{tpu_custom_call.1} parent=11 // pred_fallthru
          _
      $region12: #{tpu_custom_call.1} parent=5 // pred_fallthru
        _
      %p191 = scmp.lt.s32.totalorder %s14, 4
      // Predicated region
      $region29: #{tpu_custom_call.1} parent=5 // pred_check
        %p192 = pneg %p191
      $region30: #{tpu_custom_call.1} parent=5 // pred_check_branch
        %194 = sbr.rel (%p192) target = $region32
      $region31: #{tpu_custom_call.1} parent=5 // pred_region
        // Predicated region
        $region33: #{tpu_custom_call.1} parent=31 // pred_check
          %p195 = pneg %p46
        $region34: #{tpu_custom_call.1} parent=31 // pred_check_branch
          %197 = sbr.rel (%p195) target = $region36
        $region35: #{tpu_custom_call.1} parent=31 // pred_region
          %p198 = scmp.lt.s32.totalorder %s21, 1
          %s199 = scalar_select %p198, %s21, 1
          %s200 = smul.addr %s199, 12
          %s201 = smul.addr %s200, 4
          %s202 = scalar_lea.vmem %s0, %s201
        $region36: #{tpu_custom_call.1} parent=31 // pred_fallthru
          _
      $region32: #{tpu_custom_call.1} parent=5 // pred_fallthru
        _
      %p203 = scmp.le.s32.totalorder 1, %s14
      %p204 = scmp.lt.s32.totalorder %s14, 5
      %p205 = pnand %p203, %p204
      %p206 = pneg %p205
      // Predicated region
      $region37: #{tpu_custom_call.1} parent=5 // pred_check
        _
      $region38: #{tpu_custom_call.1} parent=5 // pred_check_branch
        %208 = sbr.rel (%p205) target = $region40
      $region39: #{tpu_custom_call.1} parent=5 // pred_region
        %s209 = ssub.s32 %s14, 1
        %p210 = scmp.lt.s32.totalorder %s23, 1
        %s211 = scalar_select %p210, %s23, 1
        %s212 = smul.addr %s211, 12
        %s213 = smul.addr %s212, 4
        %s214 = scalar_lea.vmem %s0, %s213
        %p215 = pneg %p52
        %p216 = pneg %p49
        %p217 = pneg %p73
        %p218 = pneg %p70
        %p219 = pneg %p94
        %p220 = pneg %p91
        %p221 = pneg %p115
        %p222 = pneg %p112
        %p223 = pneg %p136
        %p224 = pneg %p133
        %p225 = pneg %p164
        %p226 = pneg %p161
        %s227 = sand.u32 %s151, 1
        %s228 = scalar_lea.sflag [#allocation4], %s227
        %s229 = sand.u32 %s151, 1
        %s230 = smul.addr %s229, 16
        %s231 = scalar_lea.vmem [#allocation3], %s230
        %p232 = scmp.lt.s32.totalorder %s23, 1
        %s233 = scalar_select %p232, %s23, 1
        %s234 = smul.addr %s233, 12
        %s235 = smul.addr %s234, 4
        %s236 = scalar_lea.vmem %s0, %s235
        %p238 = scmp.eq.s32.totalorder %s24, 0
        // Predicated region
        $region41: #{tpu_custom_call.1} parent=39 // pred_check
          %p239 = pneg %p238
        $region42: #{tpu_custom_call.1} parent=39 // pred_check_branch
          %241 = sbr.rel (%p239) target = $region44
        $region43: #{tpu_custom_call.1} parent=39 // pred_region
          %242 = vst [vmem:[#allocation2] sm:$0xff] 0
          %243 = vst [vmem:[#allocation2 + $0x8] sm:$0xff] 0
          %244 = vst [vmem:[#allocation2 + $0x10] sm:$0xff] 0
          %245 = vst [vmem:[#allocation2 + $0x18] sm:$0xff] 0
          %246 = vst [vmem:[#allocation2 + $0x20] sm:$0xff] 0
          %247 = vst [vmem:[#allocation2 + $0x28] sm:$0xff] 0
          %248 = vst [vmem:[#allocation2 + $0x30] sm:$0xff] 0
          %249 = vst [vmem:[#allocation2 + $0x38] sm:$0xff] 0
          %250 = vst [vmem:[#allocation2 + $0x40] sm:$0xff] 0
        $region44: #{tpu_custom_call.1} parent=39 // pred_fallthru
          _
        %v251 = vld [vmem:[%s1] sm:$0xf]
        %v252 = vld [vmem:[%s1 + $0x4] sm:$0xf]
        %v253 = vld [vmem:[%s1 + $0x8] sm:$0xf]
        %v254 = vld [vmem:[%s1 + $0xc] sm:$0xf]
        %v255 = vld [vmem:[%s1 + $0x10] sm:$0xf]
        %v256 = vld [vmem:[%s1 + $0x14] sm:$0xf]
        %v257 = vld [vmem:[%s1 + $0x18] sm:$0xf]
        %v258 = vld [vmem:[%s1 + $0x1c] sm:$0xf]
        %v259 = vld [vmem:[%s1 + $0x20] sm:$0xf]
        %v260 = vld [vmem:[%s1 + $0x24] sm:$0xf]
        %v261 = vld [vmem:[%s1 + $0x28] sm:$0xf]
        %v262 = vld [vmem:[%s1 + $0x2c] sm:$0xf]
        %v263 = vld [vmem:[%s1 + $0x30] sm:$0xf]
        %v264 = vld [vmem:[%s1 + $0x34] sm:$0xf]
        %v265 = vld [vmem:[%s1 + $0x38] sm:$0xf]
        %v266 = vld [vmem:[%s1 + $0x3c] sm:$0xf]
        %v267 = vld [vmem:[%s1 + $0x40] sm:$0xf]
        %v268 = vld [vmem:[%s1 + $0x44] sm:$0xf]
        %v269 = vld [vmem:[%s1 + $0x48] sm:$0xf]
        %v270 = vld [vmem:[%s1 + $0x4c] sm:$0xf]
        %v271 = vld [vmem:[%s1 + $0x50] sm:$0xf]
        %v272 = vld [vmem:[%s1 + $0x54] sm:$0xf]
        %v273 = vld [vmem:[%s1 + $0x58] sm:$0xf]
        %v274 = vld [vmem:[%s1 + $0x5c] sm:$0xf]
        %v275 = vld [vmem:[%s1 + $0x60] sm:$0xf]
        %v276 = vld [vmem:[%s1 + $0x64] sm:$0xf]
        %v277 = vld [vmem:[%s1 + $0x68] sm:$0xf]
        %v278 = vld [vmem:[%s1 + $0x6c] sm:$0xf]
        %v279 = vld [vmem:[%s1 + $0x70] sm:$0xf]
        %v280 = vld [vmem:[%s1 + $0x74] sm:$0xf]
        %v281 = vld [vmem:[%s1 + $0x78] sm:$0xf]
        %v282 = vld [vmem:[%s1 + $0x7c] sm:$0xf]
        %v283 = vld [vmem:[%s1 + $0x80] sm:$0xf]
        %v284 = vld [vmem:[%s1 + $0x84] sm:$0xf]
        %v285 = vld [vmem:[%s1 + $0x88] sm:$0xf]
        %v286 = vld [vmem:[%s1 + $0x8c] sm:$0xf]
        %v287 = vld [vmem:[%s1 + $0x90] sm:$0xf]
        %v288 = vld [vmem:[%s1 + $0x94] sm:$0xf]
        %v289 = vld [vmem:[%s1 + $0x98] sm:$0xf]
        %v290 = vld [vmem:[%s1 + $0x9c] sm:$0xf]
        %v291 = vld [vmem:[%s1 + $0xa0] sm:$0xf]
        %v292 = vld [vmem:[%s1 + $0xa4] sm:$0xf]
        %v293 = vld [vmem:[%s1 + $0xa8] sm:$0xf]
        %v294 = vld [vmem:[%s1 + $0xac] sm:$0xf]
        %v295 = vld [vmem:[%s1 + $0xb0] sm:$0xf]
        %v296 = vld [vmem:[%s1 + $0xb4] sm:$0xf]
        %v297 = vld [vmem:[%s1 + $0xb8] sm:$0xf]
        %v298 = vld [vmem:[%s1 + $0xbc] sm:$0xf]
        %v299 = vld [vmem:[%s1 + $0xc0] sm:$0xf]
        %v300 = vld [vmem:[%s1 + $0xc4] sm:$0xf]
        %v301 = vld [vmem:[%s1 + $0xc8] sm:$0xf]
        %v302 = vld [vmem:[%s1 + $0xcc] sm:$0xf]
        %v303 = vld [vmem:[%s1 + $0xd0] sm:$0xf]
        %v304 = vld [vmem:[%s1 + $0xd4] sm:$0xf]
        %v305 = vld [vmem:[%s1 + $0xd8] sm:$0xf]
        %v306 = vld [vmem:[%s1 + $0xdc] sm:$0xf]
        %v307 = vld [vmem:[%s1 + $0xe0] sm:$0xf]
        %v308 = vld [vmem:[%s1 + $0xe4] sm:$0xf]
        %v309 = vld [vmem:[%s1 + $0xe8] sm:$0xf]
        %v310 = vld [vmem:[%s1 + $0xec] sm:$0xf]
        %v311 = vld [vmem:[%s1 + $0xf0] sm:$0xf]
        %v312 = vld [vmem:[%s1 + $0xf4] sm:$0xf]
        %v313 = vld [vmem:[%s1 + $0xf8] sm:$0xf]
        %v314 = vld [vmem:[%s1 + $0xfc] sm:$0xf]
        %v315 = vld [vmem:[%s1 + $0x100] sm:$0xf]
        %v316 = vld [vmem:[%s1 + $0x104] sm:$0xf]
        %v317 = vld [vmem:[%s1 + $0x108] sm:$0xf]
        %v318 = vld [vmem:[%s1 + $0x10c] sm:$0xf]
        %v319 = vld [vmem:[%s1 + $0x110] sm:$0xf]
        %v320 = vld [vmem:[%s1 + $0x114] sm:$0xf]
        %v321 = vld [vmem:[%s1 + $0x118] sm:$0xf]
        %v322 = vld [vmem:[%s1 + $0x11c] sm:$0xf]
        %v323 = vld [vmem:[%s1 + $0x120] sm:$0xf]
        %v324 = vld [vmem:[%s1 + $0x124] sm:$0xf]
        %v325 = vld [vmem:[%s1 + $0x128] sm:$0xf]
        %v326 = vld [vmem:[%s1 + $0x12c] sm:$0xf]
        %v327 = vld [vmem:[%s1 + $0x130] sm:$0xf]
        %v328 = vld [vmem:[%s1 + $0x134] sm:$0xf]
        %v329 = vld [vmem:[%s1 + $0x138] sm:$0xf]
        %v330 = vld [vmem:[%s1 + $0x13c] sm:$0xf]
        %v331 = vld [vmem:[%s1 + $0x140] sm:$0xf]
        %v332 = vld [vmem:[%s1 + $0x144] sm:$0xf]
        %v333 = vld [vmem:[%s1 + $0x148] sm:$0xf]
        %v334 = vld [vmem:[%s1 + $0x14c] sm:$0xf]
        %v335 = vld [vmem:[%s1 + $0x150] sm:$0xf]
        %v336 = vld [vmem:[%s1 + $0x154] sm:$0xf]
        %v337 = vld [vmem:[%s1 + $0x158] sm:$0xf]
        %v338 = vld [vmem:[%s1 + $0x15c] sm:$0xf]
        %v339 = vld [vmem:[%s1 + $0x160] sm:$0xf]
        %v340 = vld [vmem:[%s1 + $0x164] sm:$0xf]
        %v341 = vld [vmem:[%s1 + $0x168] sm:$0xf]
        %v342 = vld [vmem:[%s1 + $0x16c] sm:$0xf]
        %v343 = vld [vmem:[%s1 + $0x170] sm:$0xf]
        %v344 = vld [vmem:[%s1 + $0x174] sm:$0xf]
        %v345 = vld [vmem:[%s1 + $0x178] sm:$0xf]
        %v346 = vld [vmem:[%s1 + $0x17c] sm:$0xf]
        %v347 = vld [vmem:[%s1 + $0x180] sm:$0xf]
        %v348 = vld [vmem:[%s1 + $0x184] sm:$0xf]
        %v349 = vld [vmem:[%s1 + $0x188] sm:$0xf]
        %v350 = vld [vmem:[%s1 + $0x18c] sm:$0xf]
        %v351 = vld [vmem:[%s1 + $0x190] sm:$0xf]
        %v352 = vld [vmem:[%s1 + $0x194] sm:$0xf]
        %v353 = vld [vmem:[%s1 + $0x198] sm:$0xf]
        %v354 = vld [vmem:[%s1 + $0x19c] sm:$0xf]
        %v355 = vld [vmem:[%s1 + $0x1a0] sm:$0xf]
        %v356 = vld [vmem:[%s1 + $0x1a4] sm:$0xf]
        %v357 = vld [vmem:[%s1 + $0x1a8] sm:$0xf]
        %v358 = vld [vmem:[%s1 + $0x1ac] sm:$0xf]
        %v359 = vld [vmem:[%s1 + $0x1b0] sm:$0xf]
        %v360 = vld [vmem:[%s1 + $0x1b4] sm:$0xf]
        %v361 = vld [vmem:[%s1 + $0x1b8] sm:$0xf]
        %v362 = vld [vmem:[%s1 + $0x1bc] sm:$0xf]
        %v363 = vld [vmem:[%s1 + $0x1c0] sm:$0xf]
        %v364 = vld [vmem:[%s1 + $0x1c4] sm:$0xf]
        %v365 = vld [vmem:[%s1 + $0x1c8] sm:$0xf]
        %v366 = vld [vmem:[%s1 + $0x1cc] sm:$0xf]
        %v367 = vld [vmem:[%s1 + $0x1d0] sm:$0xf]
        %v368 = vld [vmem:[%s1 + $0x1d4] sm:$0xf]
        %v369 = vld [vmem:[%s1 + $0x1d8] sm:$0xf]
        %v370 = vld [vmem:[%s1 + $0x1dc] sm:$0xf]
        %v371 = vld [vmem:[%s1 + $0x1e0] sm:$0xf]
        %v372 = vld [vmem:[%s1 + $0x1e4] sm:$0xf]
        %v373 = vld [vmem:[%s1 + $0x1e8] sm:$0xf]
        %v374 = vld [vmem:[%s1 + $0x1ec] sm:$0xf]
        %v375 = vld [vmem:[%s1 + $0x1f0] sm:$0xf]
        %v376 = vld [vmem:[%s1 + $0x1f4] sm:$0xf]
        %v377 = vld [vmem:[%s1 + $0x1f8] sm:$0xf]
        %v378 = vld [vmem:[%s1 + $0x1fc] sm:$0xf]
        %v379 = vld [vmem:[%s1 + $0x200] sm:$0xf]
        %v380 = vld [vmem:[%s1 + $0x204] sm:$0xf]
        %v381 = vld [vmem:[%s1 + $0x208] sm:$0xf]
        %v382 = vld [vmem:[%s1 + $0x20c] sm:$0xf]
        %v383 = vld [vmem:[%s1 + $0x210] sm:$0xf]
        %v384 = vld [vmem:[%s1 + $0x214] sm:$0xf]
        %v385 = vld [vmem:[%s1 + $0x218] sm:$0xf]
        %v386 = vld [vmem:[%s1 + $0x21c] sm:$0xf]
        %v387 = vld [vmem:[%s1 + $0x220] sm:$0xf]
        %v388 = vld [vmem:[%s1 + $0x224] sm:$0xf]
        %v389 = vld [vmem:[%s1 + $0x228] sm:$0xf]
        %v390 = vld [vmem:[%s1 + $0x22c] sm:$0xf]
        %v391 = vld [vmem:[%s1 + $0x230] sm:$0xf]
        %v392 = vld [vmem:[%s1 + $0x234] sm:$0xf]
        %v393 = vld [vmem:[%s1 + $0x238] sm:$0xf]
        %v394 = vld [vmem:[%s1 + $0x23c] sm:$0xf]
        %v395 = vld [vmem:[%s2] sm:$0x1]
        %v397 = vlaneseq
        %v398 = vshrl.u32 %v397, 7
        %v399 = vsub.s32 0, %v398
        %v400 = vrot.slane %v395, %v399
        %s402 = smul.u32 %s24, 6
        %s403 = smul.addr %s402, 4
        %s404 = scalar_lea.vmem %s236, %s403
        %v405 = vld [vmem:[%s404] sm:$0x3]
        %v406 = vld [vmem:[%s404 + $0x4] sm:$0x3]
        %v407 = vld [vmem:[%s404 + $0x8] sm:$0x3]
        %v408 = vld [vmem:[%s404 + $0xc] sm:$0x3]
        %v413 = vcombine.low %v405, %v406
        %v414 = vcombine.low %v407, %v408
        %v416 = vunpack.c.l.s4 1983009808
        %v417 = vunpack.c.0.s8 %v416
        %v418 = vlaneseq
        %v419 = vshrl.u32 %v418, 7
        %v420 = vsub.s32 %v417, %v419
        %v421 = vrot.slane %v413, %v420
        %v423 = vunpack.c.l.s4 1983009808
        %v424 = vunpack.c.0.s8 %v423
        %v425 = vlaneseq
        %v426 = vshrl.u32 %v425, 7
        %v427 = vsub.s32 %v424, %v426
        %v428 = vrot.slane %v414, %v427
        %v429 = vcombine.low %v421, %v428
        %vm431 = vcmask 130048
        %432 = vst.msk [vmem:[#allocation2] sm:$0xff] %vm431, %v429
        %v433 = vld [vmem:[%s404] sm:$0x7]
        %v434 = vld [vmem:[%s404 + $0x4] sm:$0x7]
        %v435 = vld [vmem:[%s404 + $0x8] sm:$0x7]
        %v436 = vld [vmem:[%s404 + $0xc] sm:$0x7]
        %v442 = vunpack.c.l.s4 1983009808
        %v443 = vunpack.c.0.s8 %v442
        %v444 = vlaneseq
        %v445 = vshrl.u32 %v444, 7
        %v446 = vsub.s32 %v443, %v445
        %v447 = vrot.slane %v433, %v446
        %v448 = vcombine.high %v447, %v447
        %v450 = vunpack.c.l.s4 1983009808
        %v451 = vunpack.c.0.s8 %v450
        %v452 = vlaneseq
        %v453 = vshrl.u32 %v452, 7
        %v454 = vsub.s32 %v451, %v453
        %v455 = vrot.slane %v434, %v454
        %v456 = vcombine.high %v455, %v455
        %v458 = vunpack.c.l.s4 1983009808
        %v459 = vunpack.c.0.s8 %v458
        %v460 = vlaneseq
        %v461 = vshrl.u32 %v460, 7
        %v462 = vsub.s32 %v459, %v461
        %v463 = vrot.slane %v435, %v462
        %v464 = vcombine.high %v463, %v463
        %v466 = vunpack.c.l.s4 1983009808
        %v467 = vunpack.c.0.s8 %v466
        %v468 = vlaneseq
        %v469 = vshrl.u32 %v468, 7
        %v470 = vsub.s32 %v467, %v469
        %v471 = vrot.slane %v436, %v470
        %v472 = vcombine.high %v471, %v471
        %vm473 = vsmask.f32 1280
        %vm474 = vsmask.f32 3336
        %vm475 = vmor %vm473, %vm474
        %vm476 = vsmask.f32 5392
        %vm477 = vmor %vm475, %vm476
        %vm478 = vsmask.f32 7448
        %vm479 = vmor %vm477, %vm478
        %v481 = vshrl.u32 %v447, 16
        %v483 = vrot.slane %v481, 6
        %v484 = vshll.u32 %v447, 16
        %v486 = vrot.slane %v484, 7
        %v487 = vor.u32 %v483, %v486
        %v488 = vrot.slane %v487, 2
        %v490 = vshll.u32 %v448, 16
        %v492 = vrot.slane %v490, 7
        %v493 = vsel %vm479, %v488, %v492
        %v495 = vshrl.u32 %v455, 16
        %v497 = vrot.slane %v495, 6
        %v498 = vshll.u32 %v455, 16
        %v500 = vrot.slane %v498, 7
        %v501 = vor.u32 %v497, %v500
        %v502 = vrot.slane %v501, 2
        %v504 = vshll.u32 %v456, 16
        %v506 = vrot.slane %v504, 7
        %v507 = vsel %vm479, %v502, %v506
        %v509 = vshrl.u32 %v463, 16
        %v511 = vrot.slane %v509, 6
        %v512 = vshll.u32 %v463, 16
        %v514 = vrot.slane %v512, 7
        %v515 = vor.u32 %v511, %v514
        %v516 = vrot.slane %v515, 2
        %v518 = vshll.u32 %v464, 16
        %v520 = vrot.slane %v518, 7
        %v521 = vsel %vm479, %v516, %v520
        %v523 = vshrl.u32 %v471, 16
        %v525 = vrot.slane %v523, 6
        %v526 = vshll.u32 %v471, 16
        %v528 = vrot.slane %v526, 7
        %v529 = vor.u32 %v525, %v528
        %v530 = vrot.slane %v529, 2
        %v532 = vshll.u32 %v472, 16
        %v534 = vrot.slane %v532, 7
        %v535 = vsel %vm479, %v530, %v534
        %v536 = vcombine.low %v493, %v507
        %v537 = vcombine.low %v521, %v535
        %v539 = vunpack.c.l.s4 1983009808
        %v540 = vunpack.c.0.s8 %v539
        %v541 = vlaneseq
        %v542 = vshrl.u32 %v541, 7
        %v543 = vsub.s32 %v540, %v542
        %v544 = vrot.slane %v536, %v543
        %v546 = vunpack.c.l.s4 1983009808
        %v547 = vunpack.c.0.s8 %v546
        %v548 = vlaneseq
        %v549 = vshrl.u32 %v548, 7
        %v550 = vsub.s32 %v547, %v549
        %v551 = vrot.slane %v537, %v550
        %v552 = vcombine.low %v544, %v551
        %554 = vst.msk [vmem:[#allocation2 + $0x8] sm:$0xff] %vm431, %v552
        %v555 = vld [vmem:[%s404] sm:$0x6]
        %v556 = vld [vmem:[%s404 + $0x4] sm:$0x6]
        %v557 = vld [vmem:[%s404 + $0x8] sm:$0x6]
        %v558 = vld [vmem:[%s404 + $0xc] sm:$0x6]
        %v564 = vunpack.c.l.s4 1983009808
        %v565 = vunpack.c.0.s8 %v564
        %v566 = vlaneseq
        %v567 = vshrl.u32 %v566, 7
        %v568 = vsub.s32 %v565, %v567
        %v569 = vrot.slane %v555, %v568
        %v570 = vcombine.high %v569, %v569
        %v572 = vunpack.c.l.s4 1983009808
        %v573 = vunpack.c.0.s8 %v572
        %v574 = vlaneseq
        %v575 = vshrl.u32 %v574, 7
        %v576 = vsub.s32 %v573, %v575
        %v577 = vrot.slane %v556, %v576
        %v578 = vcombine.high %v577, %v577
        %v580 = vunpack.c.l.s4 1983009808
        %v581 = vunpack.c.0.s8 %v580
        %v582 = vlaneseq
        %v583 = vshrl.u32 %v582, 7
        %v584 = vsub.s32 %v581, %v583
        %v585 = vrot.slane %v557, %v584
        %v586 = vcombine.high %v585, %v585
        %v588 = vunpack.c.l.s4 1983009808
        %v589 = vunpack.c.0.s8 %v588
        %v590 = vlaneseq
        %v591 = vshrl.u32 %v590, 7
        %v592 = vsub.s32 %v589, %v591
        %v593 = vrot.slane %v558, %v592
        %v594 = vcombine.high %v593, %v593
        %vm595 = vcmask 1040384
        %vm596 = vcmask 1042434
        %vm597 = vmor %vm595, %vm596
        %vm598 = vcmask 1044484
        %vm599 = vmor %vm597, %vm598
        %vm600 = vcmask 1046534
        %vm601 = vmor %vm599, %vm600
        %v602 = vrot.slane %v569, 7
        %v603 = vrot.slane %v602, 2
        %v604 = vrot.slane %v570, 7
        %v605 = vsel %vm601, %v603, %v604
        %v606 = vrot.slane %v577, 7
        %v607 = vrot.slane %v606, 2
        %v608 = vrot.slane %v578, 7
        %v609 = vsel %vm601, %v607, %v608
        %v610 = vrot.slane %v585, 7
        %v611 = vrot.slane %v610, 2
        %v612 = vrot.slane %v586, 7
        %v613 = vsel %vm601, %v611, %v612
        %v614 = vrot.slane %v593, 7
        %v615 = vrot.slane %v614, 2
        %v616 = vrot.slane %v594, 7
        %v617 = vsel %vm601, %v615, %v616
        %v618 = vcombine.low %v605, %v609
        %v619 = vcombine.low %v613, %v617
        %v621 = vunpack.c.l.s4 1983009808
        %v622 = vunpack.c.0.s8 %v621
        %v623 = vlaneseq
        %v624 = vshrl.u32 %v623, 7
        %v625 = vsub.s32 %v622, %v624
        %v626 = vrot.slane %v618, %v625
        %v628 = vunpack.c.l.s4 1983009808
        %v629 = vunpack.c.0.s8 %v628
        %v630 = vlaneseq
        %v631 = vshrl.u32 %v630, 7
        %v632 = vsub.s32 %v629, %v631
        %v633 = vrot.slane %v619, %v632
        %v634 = vcombine.low %v626, %v633
        %636 = vst.msk [vmem:[#allocation2 + $0x10] sm:$0xff] %vm431, %v634
        %s637 = sadd.s32 1, %s402
        %s638 = smul.addr %s637, 4
        %s639 = scalar_lea.vmem %s236, %s638
        %v640 = vld [vmem:[%s639] sm:$0x3]
        %v641 = vld [vmem:[%s639 + $0x4] sm:$0x3]
        %v642 = vld [vmem:[%s639 + $0x8] sm:$0x3]
        %v643 = vld [vmem:[%s639 + $0xc] sm:$0x3]
        %v648 = vcombine.low %v640, %v641
        %v649 = vcombine.low %v642, %v643
        %v651 = vunpack.c.l.s4 1983009808
        %v652 = vunpack.c.0.s8 %v651
        %v653 = vlaneseq
        %v654 = vshrl.u32 %v653, 7
        %v655 = vsub.s32 %v652, %v654
        %v656 = vrot.slane %v648, %v655
        %v658 = vunpack.c.l.s4 1983009808
        %v659 = vunpack.c.0.s8 %v658
        %v660 = vlaneseq
        %v661 = vshrl.u32 %v660, 7
        %v662 = vsub.s32 %v659, %v661
        %v663 = vrot.slane %v649, %v662
        %v664 = vcombine.low %v656, %v663
        %666 = vst.msk [vmem:[#allocation2 + $0x18] sm:$0xff] %vm431, %v664
        %v667 = vld [vmem:[%s639] sm:$0x7]
        %v668 = vld [vmem:[%s639 + $0x4] sm:$0x7]
        %v669 = vld [vmem:[%s639 + $0x8] sm:$0x7]
        %v670 = vld [vmem:[%s639 + $0xc] sm:$0x7]
        %v676 = vunpack.c.l.s4 1983009808
        %v677 = vunpack.c.0.s8 %v676
        %v678 = vlaneseq
        %v679 = vshrl.u32 %v678, 7
        %v680 = vsub.s32 %v677, %v679
        %v681 = vrot.slane %v667, %v680
        %v682 = vcombine.high %v681, %v681
        %v684 = vunpack.c.l.s4 1983009808
        %v685 = vunpack.c.0.s8 %v684
        %v686 = vlaneseq
        %v687 = vshrl.u32 %v686, 7
        %v688 = vsub.s32 %v685, %v687
        %v689 = vrot.slane %v668, %v688
        %v690 = vcombine.high %v689, %v689
        %v692 = vunpack.c.l.s4 1983009808
        %v693 = vunpack.c.0.s8 %v692
        %v694 = vlaneseq
        %v695 = vshrl.u32 %v694, 7
        %v696 = vsub.s32 %v693, %v695
        %v697 = vrot.slane %v669, %v696
        %v698 = vcombine.high %v697, %v697
        %v700 = vunpack.c.l.s4 1983009808
        %v701 = vunpack.c.0.s8 %v700
        %v702 = vlaneseq
        %v703 = vshrl.u32 %v702, 7
        %v704 = vsub.s32 %v701, %v703
        %v705 = vrot.slane %v670, %v704
        %v706 = vcombine.high %v705, %v705
        %v708 = vshrl.u32 %v681, 16
        %v710 = vrot.slane %v708, 6
        %v711 = vshll.u32 %v681, 16
        %v713 = vrot.slane %v711, 7
        %v714 = vor.u32 %v710, %v713
        %v715 = vrot.slane %v714, 2
        %v717 = vshll.u32 %v682, 16
        %v719 = vrot.slane %v717, 7
        %v720 = vsel %vm479, %v715, %v719
        %v722 = vshrl.u32 %v689, 16
        %v724 = vrot.slane %v722, 6
        %v725 = vshll.u32 %v689, 16
        %v727 = vrot.slane %v725, 7
        %v728 = vor.u32 %v724, %v727
        %v729 = vrot.slane %v728, 2
        %v731 = vshll.u32 %v690, 16
        %v733 = vrot.slane %v731, 7
        %v734 = vsel %vm479, %v729, %v733
        %v736 = vshrl.u32 %v697, 16
        %v738 = vrot.slane %v736, 6
        %v739 = vshll.u32 %v697, 16
        %v741 = vrot.slane %v739, 7
        %v742 = vor.u32 %v738, %v741
        %v743 = vrot.slane %v742, 2
        %v745 = vshll.u32 %v698, 16
        %v747 = vrot.slane %v745, 7
        %v748 = vsel %vm479, %v743, %v747
        %v750 = vshrl.u32 %v705, 16
        %v752 = vrot.slane %v750, 6
        %v753 = vshll.u32 %v705, 16
        %v755 = vrot.slane %v753, 7
        %v756 = vor.u32 %v752, %v755
        %v757 = vrot.slane %v756, 2
        %v759 = vshll.u32 %v706, 16
        %v761 = vrot.slane %v759, 7
        %v762 = vsel %vm479, %v757, %v761
        %v763 = vcombine.low %v720, %v734
        %v764 = vcombine.low %v748, %v762
        %v766 = vunpack.c.l.s4 1983009808
        %v767 = vunpack.c.0.s8 %v766
        %v768 = vlaneseq
        %v769 = vshrl.u32 %v768, 7
        %v770 = vsub.s32 %v767, %v769
        %v771 = vrot.slane %v763, %v770
        %v773 = vunpack.c.l.s4 1983009808
        %v774 = vunpack.c.0.s8 %v773
        %v775 = vlaneseq
        %v776 = vshrl.u32 %v775, 7
        %v777 = vsub.s32 %v774, %v776
        %v778 = vrot.slane %v764, %v777
        %v779 = vcombine.low %v771, %v778
        %781 = vst.msk [vmem:[#allocation2 + $0x20] sm:$0xff] %vm431, %v779
        %v782 = vld [vmem:[%s639] sm:$0x6]
        %v783 = vld [vmem:[%s639 + $0x4] sm:$0x6]
        %v784 = vld [vmem:[%s639 + $0x8] sm:$0x6]
        %v785 = vld [vmem:[%s639 + $0xc] sm:$0x6]
        %v791 = vunpack.c.l.s4 1983009808
        %v792 = vunpack.c.0.s8 %v791
        %v793 = vlaneseq
        %v794 = vshrl.u32 %v793, 7
        %v795 = vsub.s32 %v792, %v794
        %v796 = vrot.slane %v782, %v795
        %v797 = vcombine.high %v796, %v796
        %v799 = vunpack.c.l.s4 1983009808
        %v800 = vunpack.c.0.s8 %v799
        %v801 = vlaneseq
        %v802 = vshrl.u32 %v801, 7
        %v803 = vsub.s32 %v800, %v802
        %v804 = vrot.slane %v783, %v803
        %v805 = vcombine.high %v804, %v804
        %v807 = vunpack.c.l.s4 1983009808
        %v808 = vunpack.c.0.s8 %v807
        %v809 = vlaneseq
        %v810 = vshrl.u32 %v809, 7
        %v811 = vsub.s32 %v808, %v810
        %v812 = vrot.slane %v784, %v811
        %v813 = vcombine.high %v812, %v812
        %v815 = vunpack.c.l.s4 1983009808
        %v816 = vunpack.c.0.s8 %v815
        %v817 = vlaneseq
        %v818 = vshrl.u32 %v817, 7
        %v819 = vsub.s32 %v816, %v818
        %v820 = vrot.slane %v785, %v819
        %v821 = vcombine.high %v820, %v820
        %v822 = vrot.slane %v796, 7
        %v823 = vrot.slane %v822, 2
        %v824 = vrot.slane %v797, 7
        %v825 = vsel %vm601, %v823, %v824
        %v826 = vrot.slane %v804, 7
        %v827 = vrot.slane %v826, 2
        %v828 = vrot.slane %v805, 7
        %v829 = vsel %vm601, %v827, %v828
        %v830 = vrot.slane %v812, 7
        %v831 = vrot.slane %v830, 2
        %v832 = vrot.slane %v813, 7
        %v833 = vsel %vm601, %v831, %v832
        %v834 = vrot.slane %v820, 7
        %v835 = vrot.slane %v834, 2
        %v836 = vrot.slane %v821, 7
        %v837 = vsel %vm601, %v835, %v836
        %v838 = vcombine.low %v825, %v829
        %v839 = vcombine.low %v833, %v837
        %v841 = vunpack.c.l.s4 1983009808
        %v842 = vunpack.c.0.s8 %v841
        %v843 = vlaneseq
        %v844 = vshrl.u32 %v843, 7
        %v845 = vsub.s32 %v842, %v844
        %v846 = vrot.slane %v838, %v845
        %v848 = vunpack.c.l.s4 1983009808
        %v849 = vunpack.c.0.s8 %v848
        %v850 = vlaneseq
        %v851 = vshrl.u32 %v850, 7
        %v852 = vsub.s32 %v849, %v851
        %v853 = vrot.slane %v839, %v852
        %v854 = vcombine.low %v846, %v853
        %856 = vst.msk [vmem:[#allocation2 + $0x28] sm:$0xff] %vm431, %v854
        %s857 = sadd.s32 2, %s402
        %s858 = smul.addr %s857, 4
        %s859 = scalar_lea.vmem %s236, %s858
        %v860 = vld [vmem:[%s859] sm:$0x3]
        %v861 = vld [vmem:[%s859 + $0x4] sm:$0x3]
        %v862 = vld [vmem:[%s859 + $0x8] sm:$0x3]
        %v863 = vld [vmem:[%s859 + $0xc] sm:$0x3]
        %v868 = vcombine.low %v860, %v861
        %v869 = vcombine.low %v862, %v863
        %v871 = vunpack.c.l.s4 1983009808
        %v872 = vunpack.c.0.s8 %v871
        %v873 = vlaneseq
        %v874 = vshrl.u32 %v873, 7
        %v875 = vsub.s32 %v872, %v874
        %v876 = vrot.slane %v868, %v875
        %v878 = vunpack.c.l.s4 1983009808
        %v879 = vunpack.c.0.s8 %v878
        %v880 = vlaneseq
        %v881 = vshrl.u32 %v880, 7
        %v882 = vsub.s32 %v879, %v881
        %v883 = vrot.slane %v869, %v882
        %v884 = vcombine.low %v876, %v883
        %886 = vst.msk [vmem:[#allocation2 + $0x30] sm:$0xff] %vm431, %v884
        %v887 = vld [vmem:[%s859] sm:$0x7]
        %v888 = vld [vmem:[%s859 + $0x4] sm:$0x7]
        %v889 = vld [vmem:[%s859 + $0x8] sm:$0x7]
        %v890 = vld [vmem:[%s859 + $0xc] sm:$0x7]
        %v896 = vunpack.c.l.s4 1983009808
        %v897 = vunpack.c.0.s8 %v896
        %v898 = vlaneseq
        %v899 = vshrl.u32 %v898, 7
        %v900 = vsub.s32 %v897, %v899
        %v901 = vrot.slane %v887, %v900
        %v902 = vcombine.high %v901, %v901
        %v904 = vunpack.c.l.s4 1983009808
        %v905 = vunpack.c.0.s8 %v904
        %v906 = vlaneseq
        %v907 = vshrl.u32 %v906, 7
        %v908 = vsub.s32 %v905, %v907
        %v909 = vrot.slane %v888, %v908
        %v910 = vcombine.high %v909, %v909
        %v912 = vunpack.c.l.s4 1983009808
        %v913 = vunpack.c.0.s8 %v912
        %v914 = vlaneseq
        %v915 = vshrl.u32 %v914, 7
        %v916 = vsub.s32 %v913, %v915
        %v917 = vrot.slane %v889, %v916
        %v918 = vcombine.high %v917, %v917
        %v920 = vunpack.c.l.s4 1983009808
        %v921 = vunpack.c.0.s8 %v920
        %v922 = vlaneseq
        %v923 = vshrl.u32 %v922, 7
        %v924 = vsub.s32 %v921, %v923
        %v925 = vrot.slane %v890, %v924
        %v926 = vcombine.high %v925, %v925
        %v928 = vshrl.u32 %v901, 16
        %v930 = vrot.slane %v928, 6
        %v931 = vshll.u32 %v901, 16
        %v933 = vrot.slane %v931, 7
        %v934 = vor.u32 %v930, %v933
        %v935 = vrot.slane %v934, 2
        %v937 = vshll.u32 %v902, 16
        %v939 = vrot.slane %v937, 7
        %v940 = vsel %vm479, %v935, %v939
        %v942 = vshrl.u32 %v909, 16
        %v944 = vrot.slane %v942, 6
        %v945 = vshll.u32 %v909, 16
        %v947 = vrot.slane %v945, 7
        %v948 = vor.u32 %v944, %v947
        %v949 = vrot.slane %v948, 2
        %v951 = vshll.u32 %v910, 16
        %v953 = vrot.slane %v951, 7
        %v954 = vsel %vm479, %v949, %v953
        %v956 = vshrl.u32 %v917, 16
        %v958 = vrot.slane %v956, 6
        %v959 = vshll.u32 %v917, 16
        %v961 = vrot.slane %v959, 7
        %v962 = vor.u32 %v958, %v961
        %v963 = vrot.slane %v962, 2
        %v965 = vshll.u32 %v918, 16
        %v967 = vrot.slane %v965, 7
        %v968 = vsel %vm479, %v963, %v967
        %v970 = vshrl.u32 %v925, 16
        %v972 = vrot.slane %v970, 6
        %v973 = vshll.u32 %v925, 16
        %v975 = vrot.slane %v973, 7
        %v976 = vor.u32 %v972, %v975
        %v977 = vrot.slane %v976, 2
        %v979 = vshll.u32 %v926, 16
        %v981 = vrot.slane %v979, 7
        %v982 = vsel %vm479, %v977, %v981
        %v983 = vcombine.low %v940, %v954
        %v984 = vcombine.low %v968, %v982
        %v986 = vunpack.c.l.s4 1983009808
        %v987 = vunpack.c.0.s8 %v986
        %v988 = vlaneseq
        %v989 = vshrl.u32 %v988, 7
        %v990 = vsub.s32 %v987, %v989
        %v991 = vrot.slane %v983, %v990
        %v993 = vunpack.c.l.s4 1983009808
        %v994 = vunpack.c.0.s8 %v993
        %v995 = vlaneseq
        %v996 = vshrl.u32 %v995, 7
        %v997 = vsub.s32 %v994, %v996
        %v998 = vrot.slane %v984, %v997
        %v999 = vcombine.low %v991, %v998
        %1001 = vst.msk [vmem:[#allocation2 + $0x38] sm:$0xff] %vm431, %v999
        %v1002 = vld [vmem:[%s859] sm:$0x6]
        %v1003 = vld [vmem:[%s859 + $0x4] sm:$0x6]
        %v1004 = vld [vmem:[%s859 + $0x8] sm:$0x6]
        %v1005 = vld [vmem:[%s859 + $0xc] sm:$0x6]
        %v1011 = vunpack.c.l.s4 1983009808
        %v1012 = vunpack.c.0.s8 %v1011
        %v1013 = vlaneseq
        %v1014 = vshrl.u32 %v1013, 7
        %v1015 = vsub.s32 %v1012, %v1014
        %v1016 = vrot.slane %v1002, %v1015
        %v1017 = vcombine.high %v1016, %v1016
        %v1019 = vunpack.c.l.s4 1983009808
        %v1020 = vunpack.c.0.s8 %v1019
        %v1021 = vlaneseq
        %v1022 = vshrl.u32 %v1021, 7
        %v1023 = vsub.s32 %v1020, %v1022
        %v1024 = vrot.slane %v1003, %v1023
        %v1025 = vcombine.high %v1024, %v1024
        %v1027 = vunpack.c.l.s4 1983009808
        %v1028 = vunpack.c.0.s8 %v1027
        %v1029 = vlaneseq
        %v1030 = vshrl.u32 %v1029, 7
        %v1031 = vsub.s32 %v1028, %v1030
        %v1032 = vrot.slane %v1004, %v1031
        %v1033 = vcombine.high %v1032, %v1032
        %v1035 = vunpack.c.l.s4 1983009808
        %v1036 = vunpack.c.0.s8 %v1035
        %v1037 = vlaneseq
        %v1038 = vshrl.u32 %v1037, 7
        %v1039 = vsub.s32 %v1036, %v1038
        %v1040 = vrot.slane %v1005, %v1039
        %v1041 = vcombine.high %v1040, %v1040
        %v1042 = vrot.slane %v1016, 7
        %v1043 = vrot.slane %v1042, 2
        %v1044 = vrot.slane %v1017, 7
        %v1045 = vsel %vm601, %v1043, %v1044
        %v1046 = vrot.slane %v1024, 7
        %v1047 = vrot.slane %v1046, 2
        %v1048 = vrot.slane %v1025, 7
        %v1049 = vsel %vm601, %v1047, %v1048
        %v1050 = vrot.slane %v1032, 7
        %v1051 = vrot.slane %v1050, 2
        %v1052 = vrot.slane %v1033, 7
        %v1053 = vsel %vm601, %v1051, %v1052
        %v1054 = vrot.slane %v1040, 7
        %v1055 = vrot.slane %v1054, 2
        %v1056 = vrot.slane %v1041, 7
        %v1057 = vsel %vm601, %v1055, %v1056
        %v1058 = vcombine.low %v1045, %v1049
        %v1059 = vcombine.low %v1053, %v1057
        %v1061 = vunpack.c.l.s4 1983009808
        %v1062 = vunpack.c.0.s8 %v1061
        %v1063 = vlaneseq
        %v1064 = vshrl.u32 %v1063, 7
        %v1065 = vsub.s32 %v1062, %v1064
        %v1066 = vrot.slane %v1058, %v1065
        %v1068 = vunpack.c.l.s4 1983009808
        %v1069 = vunpack.c.0.s8 %v1068
        %v1070 = vlaneseq
        %v1071 = vshrl.u32 %v1070, 7
        %v1072 = vsub.s32 %v1069, %v1071
        %v1073 = vrot.slane %v1059, %v1072
        %v1074 = vcombine.low %v1066, %v1073
        %1076 = vst.msk [vmem:[#allocation2 + $0x40] sm:$0xff] %vm431, %v1074
        %v1077 = vld [vmem:[#allocation2] sm:$0xff]
        %v1078 = vld [vmem:[#allocation2 + $0x8] sm:$0xff]
        %v1079 = vld [vmem:[#allocation2 + $0x10] sm:$0xff]
        %v1080 = vld [vmem:[#allocation2 + $0x18] sm:$0xff]
        %v1081 = vld [vmem:[#allocation2 + $0x20] sm:$0xff]
        %v1082 = vld [vmem:[#allocation2 + $0x28] sm:$0xff]
        %v1083 = vld [vmem:[#allocation2 + $0x30] sm:$0xff]
        %v1084 = vld [vmem:[#allocation2 + $0x38] sm:$0xff]
        %v1085 = vld [vmem:[#allocation2 + $0x40] sm:$0xff]
        %v1230 = vunpack.c.l.b16 %v251
        %v1231 = vunpack.c.l.b16 %v252
        %v1232 = vunpack.c.l.b16 %v253
        %v1233 = vunpack.c.l.b16 %v254
        %v1234 = vunpack.c.l.b16 %v255
        %v1235 = vunpack.c.l.b16 %v256
        %v1236 = vunpack.c.l.b16 %v257
        %v1237 = vunpack.c.l.b16 %v258
        %v1238 = vunpack.c.l.b16 %v259
        %v1239 = vunpack.c.l.b16 %v260
        %v1240 = vunpack.c.l.b16 %v261
        %v1241 = vunpack.c.l.b16 %v262
        %v1242 = vunpack.c.l.b16 %v263
        %v1243 = vunpack.c.l.b16 %v264
        %v1244 = vunpack.c.l.b16 %v265
        %v1245 = vunpack.c.l.b16 %v266
        %v1246 = vunpack.c.l.b16 %v267
        %v1247 = vunpack.c.l.b16 %v268
        %v1248 = vunpack.c.l.b16 %v269
        %v1249 = vunpack.c.l.b16 %v270
        %v1250 = vunpack.c.l.b16 %v271
        %v1251 = vunpack.c.l.b16 %v272
        %v1252 = vunpack.c.l.b16 %v273
        %v1253 = vunpack.c.l.b16 %v274
        %v1254 = vunpack.c.l.b16 %v275
        %v1255 = vunpack.c.l.b16 %v276
        %v1256 = vunpack.c.l.b16 %v277
        %v1257 = vunpack.c.l.b16 %v278
        %v1258 = vunpack.c.l.b16 %v279
        %v1259 = vunpack.c.l.b16 %v280
        %v1260 = vunpack.c.l.b16 %v281
        %v1261 = vunpack.c.l.b16 %v282
        %v1262 = vunpack.c.l.b16 %v283
        %v1263 = vunpack.c.l.b16 %v284
        %v1264 = vunpack.c.l.b16 %v285
        %v1265 = vunpack.c.l.b16 %v286
        %v1266 = vunpack.c.l.b16 %v287
        %v1267 = vunpack.c.l.b16 %v288
        %v1268 = vunpack.c.l.b16 %v289
        %v1269 = vunpack.c.l.b16 %v290
        %v1270 = vunpack.c.l.b16 %v291
        %v1271 = vunpack.c.l.b16 %v292
        %v1272 = vunpack.c.l.b16 %v293
        %v1273 = vunpack.c.l.b16 %v294
        %v1274 = vunpack.c.l.b16 %v295
        %v1275 = vunpack.c.l.b16 %v296
        %v1276 = vunpack.c.l.b16 %v297
        %v1277 = vunpack.c.l.b16 %v298
        %v1278 = vunpack.c.l.b16 %v299
        %v1279 = vunpack.c.l.b16 %v300
        %v1280 = vunpack.c.l.b16 %v301
        %v1281 = vunpack.c.l.b16 %v302
        %v1282 = vunpack.c.l.b16 %v303
        %v1283 = vunpack.c.l.b16 %v304
        %v1284 = vunpack.c.l.b16 %v305
        %v1285 = vunpack.c.l.b16 %v306
        %v1286 = vunpack.c.l.b16 %v307
        %v1287 = vunpack.c.l.b16 %v308
        %v1288 = vunpack.c.l.b16 %v309
        %v1289 = vunpack.c.l.b16 %v310
        %v1290 = vunpack.c.l.b16 %v311
        %v1291 = vunpack.c.l.b16 %v312
        %v1292 = vunpack.c.l.b16 %v313
        %v1293 = vunpack.c.l.b16 %v314
        %v1294 = vunpack.c.l.b16 %v315
        %v1295 = vunpack.c.l.b16 %v316
        %v1296 = vunpack.c.l.b16 %v317
        %v1297 = vunpack.c.l.b16 %v318
        %v1298 = vunpack.c.l.b16 %v319
        %v1299 = vunpack.c.l.b16 %v320
        %v1300 = vunpack.c.l.b16 %v321
        %v1301 = vunpack.c.l.b16 %v322
        %v1302 = vunpack.c.l.b16 %v323
        %v1303 = vunpack.c.l.b16 %v324
        %v1304 = vunpack.c.l.b16 %v325
        %v1305 = vunpack.c.l.b16 %v326
        %v1306 = vunpack.c.l.b16 %v327
        %v1307 = vunpack.c.l.b16 %v328
        %v1308 = vunpack.c.l.b16 %v329
        %v1309 = vunpack.c.l.b16 %v330
        %v1310 = vunpack.c.l.b16 %v331
        %v1311 = vunpack.c.l.b16 %v332
        %v1312 = vunpack.c.l.b16 %v333
        %v1313 = vunpack.c.l.b16 %v334
        %v1314 = vunpack.c.l.b16 %v335
        %v1315 = vunpack.c.l.b16 %v336
        %v1316 = vunpack.c.l.b16 %v337
        %v1317 = vunpack.c.l.b16 %v338
        %v1318 = vunpack.c.l.b16 %v339
        %v1319 = vunpack.c.l.b16 %v340
        %v1320 = vunpack.c.l.b16 %v341
        %v1321 = vunpack.c.l.b16 %v342
        %v1322 = vunpack.c.l.b16 %v343
        %v1323 = vunpack.c.l.b16 %v344
        %v1324 = vunpack.c.l.b16 %v345
        %v1325 = vunpack.c.l.b16 %v346
        %v1326 = vunpack.c.l.b16 %v347
        %v1327 = vunpack.c.l.b16 %v348
        %v1328 = vunpack.c.l.b16 %v349
        %v1329 = vunpack.c.l.b16 %v350
        %v1330 = vunpack.c.l.b16 %v351
        %v1331 = vunpack.c.l.b16 %v352
        %v1332 = vunpack.c.l.b16 %v353
        %v1333 = vunpack.c.l.b16 %v354
        %v1334 = vunpack.c.l.b16 %v355
        %v1335 = vunpack.c.l.b16 %v356
        %v1336 = vunpack.c.l.b16 %v357
        %v1337 = vunpack.c.l.b16 %v358
        %v1338 = vunpack.c.l.b16 %v359
        %v1339 = vunpack.c.l.b16 %v360
        %v1340 = vunpack.c.l.b16 %v361
        %v1341 = vunpack.c.l.b16 %v362
        %v1342 = vunpack.c.l.b16 %v363
        %v1343 = vunpack.c.l.b16 %v364
        %v1344 = vunpack.c.l.b16 %v365
        %v1345 = vunpack.c.l.b16 %v366
        %v1346 = vunpack.c.l.b16 %v367
        %v1347 = vunpack.c.l.b16 %v368
        %v1348 = vunpack.c.l.b16 %v369
        %v1349 = vunpack.c.l.b16 %v370
        %v1350 = vunpack.c.l.b16 %v371
        %v1351 = vunpack.c.l.b16 %v372
        %v1352 = vunpack.c.l.b16 %v373
        %v1353 = vunpack.c.l.b16 %v374
        %v1354 = vunpack.c.l.b16 %v375
        %v1355 = vunpack.c.l.b16 %v376
        %v1356 = vunpack.c.l.b16 %v377
        %v1357 = vunpack.c.l.b16 %v378
        %v1358 = vunpack.c.l.b16 %v379
        %v1359 = vunpack.c.l.b16 %v380
        %v1360 = vunpack.c.l.b16 %v381
        %v1361 = vunpack.c.l.b16 %v382
        %v1362 = vunpack.c.l.b16 %v383
        %v1363 = vunpack.c.l.b16 %v384
        %v1364 = vunpack.c.l.b16 %v385
        %v1365 = vunpack.c.l.b16 %v386
        %v1366 = vunpack.c.l.b16 %v387
        %v1367 = vunpack.c.l.b16 %v388
        %v1368 = vunpack.c.l.b16 %v389
        %v1369 = vunpack.c.l.b16 %v390
        %v1370 = vunpack.c.l.b16 %v391
        %v1371 = vunpack.c.l.b16 %v392
        %v1372 = vunpack.c.l.b16 %v393
        %v1373 = vunpack.c.l.b16 %v394
        %v1374 = vpack.c.b16 %v1231, %v1230
        %v1375 = vpack.c.b16 %v1233, %v1232
        %v1376 = vpack.c.b16 %v1235, %v1234
        %v1377 = vpack.c.b16 %v1237, %v1236
        %v1378 = vpack.c.b16 %v1239, %v1238
        %v1379 = vpack.c.b16 %v1241, %v1240
        %v1380 = vpack.c.b16 %v1243, %v1242
        %v1381 = vpack.c.b16 %v1245, %v1244
        %v1382 = vpack.c.b16 %v1247, %v1246
        %v1383 = vpack.c.b16 %v1249, %v1248
        %v1384 = vpack.c.b16 %v1251, %v1250
        %v1385 = vpack.c.b16 %v1253, %v1252
        %v1386 = vpack.c.b16 %v1255, %v1254
        %v1387 = vpack.c.b16 %v1257, %v1256
        %v1388 = vpack.c.b16 %v1259, %v1258
        %v1389 = vpack.c.b16 %v1261, %v1260
        %v1390 = vpack.c.b16 %v1263, %v1262
        %v1391 = vpack.c.b16 %v1265, %v1264
        %v1392 = vpack.c.b16 %v1267, %v1266
        %v1393 = vpack.c.b16 %v1269, %v1268
        %v1394 = vpack.c.b16 %v1271, %v1270
        %v1395 = vpack.c.b16 %v1273, %v1272
        %v1396 = vpack.c.b16 %v1275, %v1274
        %v1397 = vpack.c.b16 %v1277, %v1276
        %v1398 = vpack.c.b16 %v1279, %v1278
        %v1399 = vpack.c.b16 %v1281, %v1280
        %v1400 = vpack.c.b16 %v1283, %v1282
        %v1401 = vpack.c.b16 %v1285, %v1284
        %v1402 = vpack.c.b16 %v1287, %v1286
        %v1403 = vpack.c.b16 %v1289, %v1288
        %v1404 = vpack.c.b16 %v1291, %v1290
        %v1405 = vpack.c.b16 %v1293, %v1292
        %v1406 = vpack.c.b16 %v1295, %v1294
        %v1407 = vpack.c.b16 %v1297, %v1296
        %v1408 = vpack.c.b16 %v1299, %v1298
        %v1409 = vpack.c.b16 %v1301, %v1300
        %v1410 = vpack.c.b16 %v1303, %v1302
        %v1411 = vpack.c.b16 %v1305, %v1304
        %v1412 = vpack.c.b16 %v1307, %v1306
        %v1413 = vpack.c.b16 %v1309, %v1308
        %v1414 = vpack.c.b16 %v1311, %v1310
        %v1415 = vpack.c.b16 %v1313, %v1312
        %v1416 = vpack.c.b16 %v1315, %v1314
        %v1417 = vpack.c.b16 %v1317, %v1316
        %v1418 = vpack.c.b16 %v1319, %v1318
        %v1419 = vpack.c.b16 %v1321, %v1320
        %v1420 = vpack.c.b16 %v1323, %v1322
        %v1421 = vpack.c.b16 %v1325, %v1324
        %v1422 = vpack.c.b16 %v1327, %v1326
        %v1423 = vpack.c.b16 %v1329, %v1328
        %v1424 = vpack.c.b16 %v1331, %v1330
        %v1425 = vpack.c.b16 %v1333, %v1332
        %v1426 = vpack.c.b16 %v1335, %v1334
        %v1427 = vpack.c.b16 %v1337, %v1336
        %v1428 = vpack.c.b16 %v1339, %v1338
        %v1429 = vpack.c.b16 %v1341, %v1340
        %v1430 = vpack.c.b16 %v1343, %v1342
        %v1431 = vpack.c.b16 %v1345, %v1344
        %v1432 = vpack.c.b16 %v1347, %v1346
        %v1433 = vpack.c.b16 %v1349, %v1348
        %v1434 = vpack.c.b16 %v1351, %v1350
        %v1435 = vpack.c.b16 %v1353, %v1352
        %v1436 = vpack.c.b16 %v1355, %v1354
        %v1437 = vpack.c.b16 %v1357, %v1356
        %v1438 = vpack.c.b16 %v1359, %v1358
        %v1439 = vpack.c.b16 %v1361, %v1360
        %v1440 = vpack.c.b16 %v1363, %v1362
        %v1441 = vpack.c.b16 %v1365, %v1364
        %v1442 = vpack.c.b16 %v1367, %v1366
        %v1443 = vpack.c.b16 %v1369, %v1368
        %v1444 = vpack.c.b16 %v1371, %v1370
        %v1445 = vpack.c.b16 %v1373, %v1372
        %1518 = vmatprep.subr.bf16.mxu0 0
        %1519 = vmatpush1.bf16.msra.mxu0 %v1374
        %1520 = vmatprep.subr.bf16.mxu0 0
        %1521 = vmatpush1.bf16.msra.mxu0 %v1375
        %1522 = vmatprep.subr.bf16.mxu0 0
        %1523 = vmatpush1.bf16.msra.mxu0 %v1376
        %1524 = vmatprep.subr.bf16.mxu0 0
        %1525 = vmatpush1.bf16.msra.mxu0 %v1377
        %1526 = vmatprep.subr.bf16.mxu0 0
        %1527 = vmatpush1.bf16.msra.mxu0 %v1378
        %1528 = vmatprep.subr.bf16.mxu0 0
        %1529 = vmatpush1.bf16.msra.mxu0 %v1379
        %1530 = vmatprep.subr.bf16.mxu0 0
        %1531 = vmatpush1.bf16.msra.mxu0 %v1380
        %1532 = vmatprep.subr.bf16.mxu0 0
        %1533 = vmatpush1.bf16.msra.mxu0 %v1381
        %1534 = vmatprep.subr.bf16.mxu0 0
        %1535 = vmatpush1.bf16.msra.mxu0 %v1382
        %1536 = vmatprep.subr.bf16.mxu0 0
        %1537 = vmatpush1.bf16.msra.mxu0 %v1383
        %1538 = vmatprep.subr.bf16.mxu0 0
        %1539 = vmatpush1.bf16.msra.mxu0 %v1384
        %1540 = vmatprep.subr.bf16.mxu0 0
        %1541 = vmatpush1.bf16.msra.mxu0 %v1385
        %1542 = vmatprep.subr.bf16.mxu0 0
        %1543 = vmatpush1.bf16.msra.mxu0 %v1386
        %1544 = vmatprep.subr.bf16.mxu0 0
        %1545 = vmatpush1.bf16.msra.mxu0 %v1387
        %1546 = vmatprep.subr.bf16.mxu0 0
        %1547 = vmatpush1.bf16.msra.mxu0 %v1388
        %1548 = vmatprep.subr.bf16.mxu0 0
        %1549 = vmatpush1.bf16.msra.mxu0 %v1389
        %1550 = vmatprep.mubr.bf16.mxu0 %v1078
        %1551 = vmatmul.mubr.bf16.gmra.mrb[0].mxu0 %v1077
        %v1552 = vpop.f32.mrb[0].mxu0
        %v1553 = vadd.f32 %v400, %v1552
        %v1554 = vpop.f32.mrb[0].mxu0
        %v1555 = vpop.f32.mrb[0].mxu0
        %v1556 = vadd.f32 %v400, %v1555
        %v1557 = vpop.f32.mrb[0].mxu0
        %1558 = vdwg.mxu0
        %1559 = vmatprep.subr.bf16.mxu0 0
        %1560 = vmatpush1.bf16.msra.mxu0 %v1390
        %1561 = vmatprep.subr.bf16.mxu0 0
        %1562 = vmatpush1.bf16.msra.mxu0 %v1391
        %1563 = vmatprep.subr.bf16.mxu0 0
        %1564 = vmatpush1.bf16.msra.mxu0 %v1392
        %1565 = vmatprep.subr.bf16.mxu0 0
        %1566 = vmatpush1.bf16.msra.mxu0 %v1393
        %1567 = vmatprep.subr.bf16.mxu0 0
        %1568 = vmatpush1.bf16.msra.mxu0 %v1394
        %1569 = vmatprep.subr.bf16.mxu0 0
        %1570 = vmatpush1.bf16.msra.mxu0 %v1395
        %1571 = vmatprep.subr.bf16.mxu0 0
        %1572 = vmatpush1.bf16.msra.mxu0 %v1396
        %1573 = vmatprep.subr.bf16.mxu0 0
        %1574 = vmatpush1.bf16.msra.mxu0 %v1397
        %1575 = vmatprep.subr.bf16.mxu0 0
        %1576 = vmatpush1.bf16.msra.mxu0 %v1398
        %1577 = vmatprep.subr.bf16.mxu0 0
        %1578 = vmatpush1.bf16.msra.mxu0 %v1399
        %1579 = vmatprep.subr.bf16.mxu0 0
        %1580 = vmatpush1.bf16.msra.mxu0 %v1400
        %1581 = vmatprep.subr.bf16.mxu0 0
        %1582 = vmatpush1.bf16.msra.mxu0 %v1401
        %1583 = vmatprep.subr.bf16.mxu0 0
        %1584 = vmatpush1.bf16.msra.mxu0 %v1402
        %1585 = vmatprep.subr.bf16.mxu0 0
        %1586 = vmatpush1.bf16.msra.mxu0 %v1403
        %1587 = vmatprep.subr.bf16.mxu0 0
        %1588 = vmatpush1.bf16.msra.mxu0 %v1404
        %1589 = vmatprep.subr.bf16.mxu0 0
        %1590 = vmatpush1.bf16.msra.mxu0 %v1405
        %1591 = vmatprep.mubr.bf16.mxu0 %v1080
        %1592 = vmatmul.mubr.bf16.gmra.mrb[0].mxu0 %v1079
        %v1593 = vpop.f32.mrb[0].mxu0
        %v1594 = vadd.f32 %v1553, %v1593
        %v1595 = vpop.f32.mrb[0].mxu0
        %v1596 = vpop.f32.mrb[0].mxu0
        %v1597 = vadd.f32 %v1556, %v1596
        %v1598 = vpop.f32.mrb[0].mxu0
        %1599 = vdwg.mxu0
        %1600 = vmatprep.subr.bf16.mxu0 0
        %1601 = vmatpush1.bf16.msra.mxu0 %v1406
        %1602 = vmatprep.subr.bf16.mxu0 0
        %1603 = vmatpush1.bf16.msra.mxu0 %v1407
        %1604 = vmatprep.subr.bf16.mxu0 0
        %1605 = vmatpush1.bf16.msra.mxu0 %v1408
        %1606 = vmatprep.subr.bf16.mxu0 0
        %1607 = vmatpush1.bf16.msra.mxu0 %v1409
        %1608 = vmatprep.subr.bf16.mxu0 0
        %1609 = vmatpush1.bf16.msra.mxu0 %v1410
        %1610 = vmatprep.subr.bf16.mxu0 0
        %1611 = vmatpush1.bf16.msra.mxu0 %v1411
        %1612 = vmatprep.subr.bf16.mxu0 0
        %1613 = vmatpush1.bf16.msra.mxu0 %v1412
        %1614 = vmatprep.subr.bf16.mxu0 0
        %1615 = vmatpush1.bf16.msra.mxu0 %v1413
        %1616 = vmatprep.subr.bf16.mxu0 0
        %1617 = vmatpush1.bf16.msra.mxu0 %v1414
        %1618 = vmatprep.subr.bf16.mxu0 0
        %1619 = vmatpush1.bf16.msra.mxu0 %v1415
        %1620 = vmatprep.subr.bf16.mxu0 0
        %1621 = vmatpush1.bf16.msra.mxu0 %v1416
        %1622 = vmatprep.subr.bf16.mxu0 0
        %1623 = vmatpush1.bf16.msra.mxu0 %v1417
        %1624 = vmatprep.subr.bf16.mxu0 0
        %1625 = vmatpush1.bf16.msra.mxu0 %v1418
        %1626 = vmatprep.subr.bf16.mxu0 0
        %1627 = vmatpush1.bf16.msra.mxu0 %v1419
        %1628 = vmatprep.subr.bf16.mxu0 0
        %1629 = vmatpush1.bf16.msra.mxu0 %v1420
        %1630 = vmatprep.subr.bf16.mxu0 0
        %1631 = vmatpush1.bf16.msra.mxu0 %v1421
        %1632 = vmatprep.mubr.bf16.mxu0 %v1082
        %1633 = vmatmul.mubr.bf16.gmra.mrb[0].mxu0 %v1081
        %v1634 = vpop.f32.mrb[0].mxu0
        %v1635 = vadd.f32 %v1594, %v1634
        %v1636 = vpop.f32.mrb[0].mxu0
        %v1637 = vpop.f32.mrb[0].mxu0
        %v1638 = vadd.f32 %v1597, %v1637
        %v1639 = vpop.f32.mrb[0].mxu0
        %1640 = vdwg.mxu0
        %1641 = vmatprep.subr.bf16.mxu0 0
        %1642 = vmatpush1.bf16.msra.mxu0 %v1422
        %1643 = vmatprep.subr.bf16.mxu0 0
        %1644 = vmatpush1.bf16.msra.mxu0 %v1423
        %1645 = vmatprep.subr.bf16.mxu0 0
        %1646 = vmatpush1.bf16.msra.mxu0 %v1424
        %1647 = vmatprep.subr.bf16.mxu0 0
        %1648 = vmatpush1.bf16.msra.mxu0 %v1425
        %1649 = vmatprep.subr.bf16.mxu0 0
        %1650 = vmatpush1.bf16.msra.mxu0 %v1426
        %1651 = vmatprep.subr.bf16.mxu0 0
        %1652 = vmatpush1.bf16.msra.mxu0 %v1427
        %1653 = vmatprep.subr.bf16.mxu0 0
        %1654 = vmatpush1.bf16.msra.mxu0 %v1428
        %1655 = vmatprep.subr.bf16.mxu0 0
        %1656 = vmatpush1.bf16.msra.mxu0 %v1429
        %1657 = vmatprep.subr.bf16.mxu0 0
        %1658 = vmatpush1.bf16.msra.mxu0 %v1430
        %1659 = vmatprep.subr.bf16.mxu0 0
        %1660 = vmatpush1.bf16.msra.mxu0 %v1431
        %1661 = vmatprep.subr.bf16.mxu0 0
        %1662 = vmatpush1.bf16.msra.mxu0 %v1432
        %1663 = vmatprep.subr.bf16.mxu0 0
        %1664 = vmatpush1.bf16.msra.mxu0 %v1433
        %1665 = vmatprep.subr.bf16.mxu0 0
        %1666 = vmatpush1.bf16.msra.mxu0 %v1434
        %1667 = vmatprep.subr.bf16.mxu0 0
        %1668 = vmatpush1.bf16.msra.mxu0 %v1435
        %1669 = vmatprep.subr.bf16.mxu0 0
        %1670 = vmatpush1.bf16.msra.mxu0 %v1436
        %1671 = vmatprep.subr.bf16.mxu0 0
        %1672 = vmatpush1.bf16.msra.mxu0 %v1437
        %1673 = vmatprep.mubr.bf16.mxu0 %v1084
        %1674 = vmatmul.mubr.bf16.gmra.mrb[0].mxu0 %v1083
        %v1675 = vpop.f32.mrb[0].mxu0
        %v1676 = vadd.f32 %v1635, %v1675
        %v1677 = vpop.f32.mrb[0].mxu0
        %v1678 = vpop.f32.mrb[0].mxu0
        %v1679 = vadd.f32 %v1638, %v1678
        %v1680 = vpop.f32.mrb[0].mxu0
        %1681 = vdwg.mxu0
        %1682 = vmatprep.subr.bf16.mxu0 0
        %1683 = vmatpush1.bf16.msra.mxu0 %v1438
        %1684 = vmatprep.subr.bf16.mxu0 0
        %1685 = vmatpush1.bf16.msra.mxu0 %v1439
        %1686 = vmatprep.subr.bf16.mxu0 0
        %1687 = vmatpush1.bf16.msra.mxu0 %v1440
        %1688 = vmatprep.subr.bf16.mxu0 0
        %1689 = vmatpush1.bf16.msra.mxu0 %v1441
        %1690 = vmatprep.subr.bf16.mxu0 0
        %1691 = vmatpush1.bf16.msra.mxu0 %v1442
        %1692 = vmatprep.subr.bf16.mxu0 0
        %1693 = vmatpush1.bf16.msra.mxu0 %v1443
        %1694 = vmatprep.subr.bf16.mxu0 0
        %1695 = vmatpush1.bf16.msra.mxu0 %v1444
        %1696 = vmatprep.subr.bf16.mxu0 0
        %1697 = vmatpush1.bf16.msra.mxu0 %v1445
        %1698 = vmatprep.subr.bf16.mxu0 0
        %1699 = vmatpush1.bf16.msra.mxu0 0
        %1700 = vmatprep.subr.bf16.mxu0 0
        %1701 = vmatpush1.bf16.msra.mxu0 0
        %1702 = vmatprep.subr.bf16.mxu0 0
        %1703 = vmatpush1.bf16.msra.mxu0 0
        %1704 = vmatprep.subr.bf16.mxu0 0
        %1705 = vmatpush1.bf16.msra.mxu0 0
        %1706 = vmatprep.subr.bf16.mxu0 0
        %1707 = vmatpush1.bf16.msra.mxu0 0
        %1708 = vmatprep.subr.bf16.mxu0 0
        %1709 = vmatpush1.bf16.msra.mxu0 0
        %1710 = vmatprep.subr.bf16.mxu0 0
        %1711 = vmatpush1.bf16.msra.mxu0 0
        %1712 = vmatprep.subr.bf16.mxu0 0
        %1713 = vmatpush1.bf16.msra.mxu0 0
        %1714 = vmatprep.mubr.bf16.mxu0 0
        %1715 = vmatmul.mubr.bf16.gmra.mrb[0].mxu0 %v1085
        %v1716 = vpop.f32.mrb[0].mxu0
        %v1717 = vadd.f32 %v1676, %v1716
        %v1718 = vpop.f32.mrb[0].mxu0
        %v1719 = vpop.f32.mrb[0].mxu0
        %v1720 = vadd.f32 %v1679, %v1719
        %v1721 = vpop.f32.mrb[0].mxu0
        %1722 = vdwg.mxu0
        %vm1723 = vcmask 523264
        %1724 = vst.msk [vmem:[%s231] sm:$0xff] %vm1723, %v1717
        %1725 = vst.msk [vmem:[%s231 + $0x8] sm:$0xff] %vm1723, %v1720
        %s1726 = sand.u32 %s151, 1
        %s1727 = scalar_lea.sflag [#allocation4], %s1726
        %s1728 = sand.u32 %s151, 1
        %s1729 = smul.addr %s1728, 16
        %s1730 = scalar_lea.vmem [#allocation3], %s1729
        // Predicated region
        $region45: #{tpu_custom_call.1} parent=39 // pred_check
          %p1731 = pneg %p161
        $region46: #{tpu_custom_call.1} parent=39 // pred_check_branch
          %1733 = sbr.rel (%p1731) target = $region48
        $region47: #{tpu_custom_call.1} parent=39 // pred_region
          %s1735 = ssub.s32 256, 256
          %1736 = vsyncadd %s1727, %s1735
          %s1737 = smul.addr %s24, 2
          %s1738 = smul.addr %s23, 4
          %s1739 = sadd.s32 %s1737, %s1738
          %s1740 = smul.addr %s1739, 128
          %s1741 = scalar_lea.hbm %s5, %s1740
          %s1742 = sshll.u32 %s1730, 4
          %s1743 = int_to_ptr.vmem [resolvable:$true] %s1742
          %1748 = dma.vmem_to_hbm [thread:$0]  %s1743, 256, %s1741, %s1727, 128, 128, 8
        $region48: #{tpu_custom_call.1} parent=39 // pred_fallthru
          _
      $region40: #{tpu_custom_call.1} parent=5 // pred_fallthru
        _
      %p1749 = scmp.le.s32.totalorder 2, %s14
      // Predicated region
      $region49: #{tpu_custom_call.1} parent=5 // pred_check
        %p1750 = pneg %p1749
      $region50: #{tpu_custom_call.1} parent=5 // pred_check_branch
        %1752 = sbr.rel (%p1750) target = $region52
      $region51: #{tpu_custom_call.1} parent=5 // pred_region
        %s1753 = ssub.s32 %s14, 2
        // Predicated region
        $region53: #{tpu_custom_call.1} parent=51 // pred_check
          %p1754 = pneg %p167
        $region54: #{tpu_custom_call.1} parent=51 // pred_check_branch
          %1756 = sbr.rel (%p1754) target = $region56
        $region55: #{tpu_custom_call.1} parent=51 // pred_region
          %s1757 = sand.u32 %s152, 1
          %s1758 = scalar_lea.sflag [#allocation4], %s1757
          %s1759 = sand.u32 %s152, 1
          %s1760 = smul.addr %s1759, 16
          %s1761 = scalar_lea.vmem [#allocation3], %s1760
          %1762 = dma.done %s1758, 256
        $region56: #{tpu_custom_call.1} parent=51 // pred_fallthru
          _
      $region52: #{tpu_custom_call.1} parent=5 // pred_fallthru
        _
    $region6: #{tpu_custom_call.1} parent=1 // loop_footer
      %s18 = sadd.s32 1, %s14
    $region7: #{tpu_custom_call.1} parent=1 // loop_footer_branch
      %13 = sbr.rel target = $region3
    $region8: #{tpu_custom_call.1} parent=1 // loop_exit
      _
    %1763 = vsyncpa [#allocation4], 1
    %s1764 = scalar_lea.sflag [#allocation4], 1
    %1765 = vsyncpa %s1764, 1

</llo_original>
